<compile_context>
chip_gen: v7x
topology: tpu7x:2x2x1
jax: 0.10.0
libtpu: 0.0.40
codegen_flags: <defaults>
</compile_context>

<pallas_src>
import functools
import math

import jax
import jax.numpy as jnp
from jax.experimental import pallas as pl
from jax.experimental.pallas import tpu as pltpu


# ----------------------------------------------------------------------------
# Kernel: one grid step per batch element; all tensors in-kernel are 2D.
# ----------------------------------------------------------------------------
def _encoder_layer_kernel(
    heads,
    x_ref,      # (S, D)   inputs for this batch element (compute dtype)
    mask_ref,   # (S, S)   f32, nonzero = masked key position
    ln1g_ref,   # (1, D)   pre-attention LayerNorm gamma
    ln1b_ref,   # (1, D)
    wqkv_ref,   # (D, 3D)  [Wq/sqrt(dph) | Wk | Wv]^T   (compute dtype)
    bqkv_ref,   # (1, 3D)
    wo_ref,     # (D, D)   final_linear.weight^T        (compute dtype)
    bo_ref,     # (1, D)
    ln2g_ref,   # (1, D)   FFN-internal LayerNorm gamma
    ln2b_ref,   # (1, D)
    w1_ref,     # (D, F)   ffn.w_1.weight^T
    b1_ref,     # (1, F)
    w2_ref,     # (F, D)   ffn.w_2.weight^T
    b2_ref,     # (1, D)
    out_ref,    # (S, D)
):
    S, D = x_ref.shape
    H = heads
    dph = D // H
    cdt = wqkv_ref.dtype

    x = x_ref[...].astype(jnp.float32)                        # (S, D)

    # ---- pre-attention LayerNorm (eps 1e-6) ----
    mu = jnp.mean(x, axis=-1, keepdims=True)
    var = jnp.mean((x - mu) ** 2, axis=-1, keepdims=True)
    xn = (x - mu) * jax.lax.rsqrt(var + 1e-6) * ln1g_ref[...] + ln1b_ref[...]

    # ---- fused Q/K/V projection: one (S,D)x(D,3D) MXU matmul ----
    qkv = jnp.dot(xn.astype(cdt), wqkv_ref[...],
                  preferred_element_type=jnp.float32) + bqkv_ref[...]      # (S, 3D)
    q = qkv[:, 0:D]            # already scaled by 1/sqrt(dph) via packed weights
    k = qkv[:, D:2 * D]
    v = qkv[:, 2 * D:3 * D]

    masked = mask_ref[...] > 0.0                              # (S, S) bool

    # ---- per-head scaled-dot-product attention (H is small and static) ----
    ctx_heads = []
    for h in range(H):
        lo = h * dph
        qh = q[:, lo:lo + dph].astype(cdt)
        kh = k[:, lo:lo + dph].astype(cdt)
        vh = v[:, lo:lo + dph].astype(cdt)
        s = jax.lax.dot_general(qh, kh, (((1,), (1,)), ((), ())),
                                preferred_element_type=jnp.float32)        # (S, S)
        s = jnp.where(masked, -1e18, s)                       # masked_fill(mask, -1e18)
        smax = jnp.max(s, axis=-1, keepdims=True)
        p = jnp.exp(s - smax)
        a = p / jnp.sum(p, axis=-1, keepdims=True)            # softmax over keys (f32)
        ctx_heads.append(jnp.dot(a.astype(cdt), vh,
                                 preferred_element_type=jnp.float32))      # (S, dph)
    ctx = jnp.concatenate(ctx_heads, axis=-1)                 # (S, D) == PreSumm unshape

    # ---- output projection + residual with the ORIGINAL inputs (dropout = identity) ----
    attn_out = jnp.dot(ctx.astype(cdt), wo_ref[...],
                       preferred_element_type=jnp.float32) + bo_ref[...]   # (S, D)
    res = attn_out + x

    # ---- PositionwiseFeedForward: pre-LN, gelu (tanh approx), residual ----
    mu2 = jnp.mean(res, axis=-1, keepdims=True)
    var2 = jnp.mean((res - mu2) ** 2, axis=-1, keepdims=True)
    xn2 = (res - mu2) * jax.lax.rsqrt(var2 + 1e-6) * ln2g_ref[...] + ln2b_ref[...]

    hdn = jnp.dot(xn2.astype(cdt), w1_ref[...],
                  preferred_element_type=jnp.float32) + b1_ref[...]        # (S, F)
    c = math.sqrt(2.0 / math.pi)
    hdn = 0.5 * hdn * (1.0 + jnp.tanh(c * (hdn + 0.044715 * hdn * hdn * hdn)))
    y = jnp.dot(hdn.astype(cdt), w2_ref[...],
                preferred_element_type=jnp.float32) + b2_ref[...]          # (S, D)

    out_ref[...] = (y + res).astype(out_ref.dtype)


# ----------------------------------------------------------------------------
# One-time parameter packing (transposes, QKV fusion, query-scale fold, dtype cast).
# Done outside the per-call path so nothing is rebuilt per invocation.
# ----------------------------------------------------------------------------
def pack_params(params, heads, compute_dtype=jnp.bfloat16):
    cdt = compute_dtype
    D = params["wq"].shape[0]
    dph = D // heads
    inv = 1.0 / math.sqrt(dph)

    def row(v):
        return v.reshape(1, -1).astype(jnp.float32)

    wqkv = jnp.concatenate(
        [(params["wq"] * inv).T, params["wk"].T, params["wv"].T], axis=1
    ).astype(cdt)                                                          # (D, 3D)
    bqkv = jnp.concatenate(
        [params["bq"] * inv, params["bk"], params["bv"]]
    ).reshape(1, -1).astype(jnp.float32)                                   # (1, 3D)

    return {
        "ln1_g": row(params["ln1_g"]), "ln1_b": row(params["ln1_b"]),
        "wqkv": wqkv, "bqkv": bqkv,
        "wo": params["wo"].T.astype(cdt), "bo": row(params["bo"]),
        "ln2_g": row(params["ln2_g"]), "ln2_b": row(params["ln2_b"]),
        "w1": params["w1"].T.astype(cdt), "b1": row(params["b1"]),
        "w2": params["w2"].T.astype(cdt), "b2": row(params["b2"]),
    }


_WEIGHT_ORDER = ("ln1_g", "ln1_b", "wqkv", "bqkv", "wo", "bo",
                 "ln2_g", "ln2_b", "w1", "b1", "w2", "b2")


# ----------------------------------------------------------------------------
# Wrapper: BlockSpecs / grid + pallas_call.
# ----------------------------------------------------------------------------
def transformer_encoder_layer(inputs, mask, packed, heads):
    """inputs: (B, S, D) float32; mask: (B, S, S), nonzero/True = masked key;
    packed: output of pack_params.  Returns (B, S, D) float32."""
    B, S, D = inputs.shape
    cdt = packed["wqkv"].dtype

    weights = [packed[name] for name in _WEIGHT_ORDER]
    w_specs = [pl.BlockSpec(w.shape, lambda b: (0, 0)) for w in weights]

    kernel = functools.partial(_encoder_layer_kernel, heads)

    return pl.pallas_call(
        kernel,
        out_shape=jax.ShapeDtypeStruct((B, S, D), jnp.float32),
        grid_spec=pltpu.PrefetchScalarGridSpec(
            num_scalar_prefetch=0,
            grid=(B,),
            in_specs=[
                pl.BlockSpec((None, S, D), lambda b: (b, 0, 0)),   # inputs block
                pl.BlockSpec((None, S, S), lambda b: (b, 0, 0)),   # mask block
            ] + w_specs,
            out_specs=pl.BlockSpec((None, S, D), lambda b: (b, 0, 0)),
        ),
        compiler_params=pltpu.CompilerParams(dimension_semantics=("parallel",)),
    )(inputs.astype(cdt), mask.astype(jnp.float32), *weights)


# ----------------------------------------------------------------------------
# Pure-JAX reference mirroring the PyTorch forward exactly (eval mode, f32).
# ----------------------------------------------------------------------------
def reference_forward(inputs, mask, params, heads):
    B, S, D = inputs.shape
    H = heads
    dph = D // H
    x = inputs

    mu = x.mean(-1, keepdims=True)
    var = ((x - mu) ** 2).mean(-1, keepdims=True)
    xn = (x - mu) / jnp.sqrt(var + 1e-6) * params["ln1_g"] + params["ln1_b"]

    q = xn @ params["wq"].T + params["bq"]
    k = xn @ params["wk"].T + params["bk"]
    v = xn @ params["wv"].T + params["bv"]

    def split_heads(t):
        return t.reshape(B, S, H, dph).transpose(0, 2, 1, 3)   # (B, H, S, dph)

    qh, kh, vh = map(split_heads, (q, k, v))
    qh = qh / math.sqrt(dph)
    scores = jnp.einsum("bhqd,bhkd->bhqk", qh, kh)
    scores = jnp.where(mask[:, None, :, :], -1e18, scores)
    attn = jax.nn.softmax(scores, axis=-1)
    ctx = jnp.einsum("bhqk,bhkd->bhqd", attn, vh)
    ctx = ctx.transpose(0, 2, 1, 3).reshape(B, S, D)
    attn_out = ctx @ params["wo"].T + params["bo"]
    res = attn_out + x

    mu2 = res.mean(-1, keepdims=True)
    var2 = ((res - mu2) ** 2).mean(-1, keepdims=True)
    xn2 = (res - mu2) / jnp.sqrt(var2 + 1e-6) * params["ln2_g"] + params["ln2_b"]
    h = xn2 @ params["w1"].T + params["b1"]
    c = math.sqrt(2.0 / math.pi)
    h = 0.5 * h * (1.0 + jnp.tanh(c * (h + 0.044715 * h ** 3)))
    y = h @ params["w2"].T + params["b2"]
    return y + res


def init_params(key, d_model, d_ff):
    ks = jax.random.split(key, 16)
    s = 0.05

    def nrm(k, shape):
        return s * jax.random.normal(k, shape, jnp.float32)

    return {
        "ln1_g": 1.0 + 0.1 * jax.random.normal(ks[0], (d_model,), jnp.float32),
        "ln1_b": 0.1 * jax.random.normal(ks[1], (d_model,), jnp.float32),
        "wq": nrm(ks[2], (d_model, d_model)), "bq": nrm(ks[3], (d_model,)),
        "wk": nrm(ks[4], (d_model, d_model)), "bk": nrm(ks[5], (d_model,)),
        "wv": nrm(ks[6], (d_model, d_model)), "bv": nrm(ks[7], (d_model,)),
        "wo": nrm(ks[8], (d_model, d_model)), "bo": nrm(ks[9], (d_model,)),
        "ln2_g": 1.0 + 0.1 * jax.random.normal(ks[10], (d_model,), jnp.float32),
        "ln2_b": 0.1 * jax.random.normal(ks[11], (d_model,), jnp.float32),
        "w1": nrm(ks[12], (d_ff, d_model)), "b1": nrm(ks[13], (d_ff,)),
        "w2": nrm(ks[14], (d_model, d_ff)), "b2": nrm(ks[15], (d_model,)),
    }


if __name__ == "__main__":
    B, S, D, H, FF = 2, 8, 32, 4, 64

    key = jax.random.PRNGKey(0)
    kx, kp = jax.random.split(key)
    x = jax.random.normal(kx, (B, S, D), jnp.float32)
    lengths = jnp.array([8, 5], jnp.int32)
    key_pad = jnp.arange(S)[None, :] >= lengths[:, None]          # (B, S), True = pad
    mask = jnp.broadcast_to(key_pad[:, None, :], (B, S, S))       # (B, S, S), True = masked

    params = init_params(kp, D, FF)
    ref = reference_forward(x, mask, params, H)

    # Exact-math path (f32 MXU operands): tight tolerance against the reference.
    out_f32 = transformer_encoder_layer(x, mask, pack_params(params, H, jnp.float32), H)
    out_f32 = jax.block_until_ready(out_f32)
    assert out_f32.shape == (B, S, D)
    err32 = jnp.max(jnp.abs(out_f32 - ref))
    assert jnp.allclose(out_f32, ref, atol=1e-4, rtol=1e-4), f"f32 max abs err {err32}"

    # Performance path (bf16 MXU operands, f32 accumulation / softmax / LN / GELU).
    out_bf16 = transformer_encoder_layer(x, mask, pack_params(params, H, jnp.bfloat16), H)
    out_bf16 = jax.block_until_ready(out_bf16)
    err16 = jnp.max(jnp.abs(out_bf16 - ref))
    assert jnp.allclose(out_bf16, ref, atol=5e-2, rtol=5e-2), f"bf16 max abs err {err16}"

    print("KERNEL_OK")
</pallas_src>

<mosaic_0001>
module attributes {stable_mosaic.version = 11 : i64} {
  func.func @_encoder_layer_kernel(%arg0: i32, %arg1: memref<1x8x32xf32, #tpu.memory_space<vmem>>, %arg2: memref<1x8x8xf32, #tpu.memory_space<vmem>>, %arg3: memref<1x32xf32, #tpu.memory_space<vmem>>, %arg4: memref<1x32xf32, #tpu.memory_space<vmem>>, %arg5: memref<32x96xf32, #tpu.memory_space<vmem>>, %arg6: memref<1x96xf32, #tpu.memory_space<vmem>>, %arg7: memref<32x32xf32, #tpu.memory_space<vmem>>, %arg8: memref<1x32xf32, #tpu.memory_space<vmem>>, %arg9: memref<1x32xf32, #tpu.memory_space<vmem>>, %arg10: memref<1x32xf32, #tpu.memory_space<vmem>>, %arg11: memref<32x64xf32, #tpu.memory_space<vmem>>, %arg12: memref<1x64xf32, #tpu.memory_space<vmem>>, %arg13: memref<64x32xf32, #tpu.memory_space<vmem>>, %arg14: memref<1x32xf32, #tpu.memory_space<vmem>>, %arg15: memref<1x8x32xf32, #tpu.memory_space<vmem>>) attributes {dimension_semantics = [#tpu.dimension_semantics<parallel>], iteration_bounds = array<i64: 2>, scalar_prefetch = 0 : i64, scratch_operands = 0 : i64, tpu.core_type = #tpu.core_type<tc>, window_params = [{transform_indices = @transform_0, window_bounds = array<i64: 1, 8, 32>}, {transform_indices = @transform_1, window_bounds = array<i64: 1, 8, 8>}, {pipeline_mode = #tpu.pipeline_mode<synchronous>, transform_indices = @transform_2, window_bounds = array<i64: 1, 32>}, {pipeline_mode = #tpu.pipeline_mode<synchronous>, transform_indices = @transform_3, window_bounds = array<i64: 1, 32>}, {pipeline_mode = #tpu.pipeline_mode<synchronous>, transform_indices = @transform_4, window_bounds = array<i64: 32, 96>}, {pipeline_mode = #tpu.pipeline_mode<synchronous>, transform_indices = @transform_5, window_bounds = array<i64: 1, 96>}, {pipeline_mode = #tpu.pipeline_mode<synchronous>, transform_indices = @transform_6, window_bounds = array<i64: 32, 32>}, {pipeline_mode = #tpu.pipeline_mode<synchronous>, transform_indices = @transform_7, window_bounds = array<i64: 1, 32>}, {pipeline_mode = #tpu.pipeline_mode<synchronous>, transform_indices = @transform_8, window_bounds = array<i64: 1, 32>}, {pipeline_mode = #tpu.pipeline_mode<synchronous>, transform_indices = @transform_9, window_bounds = array<i64: 1, 32>}, {pipeline_mode = #tpu.pipeline_mode<synchronous>, transform_indices = @transform_10, window_bounds = array<i64: 32, 64>}, {pipeline_mode = #tpu.pipeline_mode<synchronous>, transform_indices = @transform_11, window_bounds = array<i64: 1, 64>}, {pipeline_mode = #tpu.pipeline_mode<synchronous>, transform_indices = @transform_12, window_bounds = array<i64: 64, 32>}, {pipeline_mode = #tpu.pipeline_mode<synchronous>, transform_indices = @transform_13, window_bounds = array<i64: 1, 32>}, {transform_indices = @transform_14, window_bounds = array<i64: 1, 8, 32>}]} {
    %c0 = arith.constant 0 : index
    %c0_0 = arith.constant 0 : index
    %c0_1 = arith.constant 0 : index
    %0 = vector.load %arg1[%c0, %c0_0, %c0_1] : memref<1x8x32xf32, #tpu.memory_space<vmem>>, vector<1x8x32xf32>
    %1 = vector.shape_cast %0 : vector<1x8x32xf32> to vector<8x32xf32>
    %cst = arith.constant dense<0.000000e+00> : vector<8xf32>
    %2 = vector.multi_reduction <add>, %1, %cst [1] : vector<8x32xf32> to vector<8xf32>
    %3 = vector.shape_cast %2 : vector<8xf32> to vector<8x1xf32>
    %cst_2 = arith.constant 3.200000e+01 : f32
    %4 = vector.broadcast %cst_2 : f32 to vector<8x1xf32>
    %5 = arith.divf %3, %4 : vector<8x1xf32>
    %6 = vector.broadcast %5 : vector<8x1xf32> to vector<8x32xf32>
    %7 = arith.subf %1, %6 : vector<8x32xf32>
    %8 = arith.mulf %7, %7 : vector<8x32xf32>
    %cst_3 = arith.constant dense<0.000000e+00> : vector<8xf32>
    %9 = vector.multi_reduction <add>, %8, %cst_3 [1] : vector<8x32xf32> to vector<8xf32>
    %10 = vector.shape_cast %9 : vector<8xf32> to vector<8x1xf32>
    %cst_4 = arith.constant 3.200000e+01 : f32
    %11 = vector.broadcast %cst_4 : f32 to vector<8x1xf32>
    %12 = arith.divf %10, %11 : vector<8x1xf32>
    %13 = vector.broadcast %5 : vector<8x1xf32> to vector<8x32xf32>
    %14 = arith.subf %1, %13 : vector<8x32xf32>
    %cst_5 = arith.constant 9.99999997E-7 : f32
    %15 = vector.broadcast %cst_5 : f32 to vector<8x1xf32>
    %16 = arith.addf %12, %15 : vector<8x1xf32>
    %17 = math.rsqrt %16 : vector<8x1xf32>
    %18 = vector.broadcast %17 : vector<8x1xf32> to vector<8x32xf32>
    %19 = arith.mulf %14, %18 : vector<8x32xf32>
    %c0_6 = arith.constant 0 : index
    %c0_7 = arith.constant 0 : index
    %20 = vector.load %arg3[%c0_6, %c0_7] : memref<1x32xf32, #tpu.memory_space<vmem>>, vector<1x32xf32>
    %21 = vector.broadcast %20 : vector<1x32xf32> to vector<8x32xf32>
    %22 = arith.mulf %19, %21 : vector<8x32xf32>
    %c0_8 = arith.constant 0 : index
    %c0_9 = arith.constant 0 : index
    %23 = vector.load %arg4[%c0_8, %c0_9] : memref<1x32xf32, #tpu.memory_space<vmem>>, vector<1x32xf32>
    %24 = vector.broadcast %23 : vector<1x32xf32> to vector<8x32xf32>
    %25 = arith.addf %22, %24 : vector<8x32xf32>
    %c0_10 = arith.constant 0 : index
    %c0_11 = arith.constant 0 : index
    %26 = vector.load %arg5[%c0_10, %c0_11] : memref<32x96xf32, #tpu.memory_space<vmem>>, vector<32x96xf32>
    %cst_12 = arith.constant dense<0.000000e+00> : vector<8x96xf32>
    %27 = tpu.matmul %25, %26, %cst_12 {dimension_numbers = #tpu.dot_dimension_numbers<[1], [0], [0], [1], [0, 0, 1, 1], [], []>} : vector<8x32xf32>, vector<32x96xf32>, vector<8x96xf32> -> vector<8x96xf32>
    %c0_13 = arith.constant 0 : index
    %c0_14 = arith.constant 0 : index
    %28 = vector.load %arg6[%c0_13, %c0_14] : memref<1x96xf32, #tpu.memory_space<vmem>>, vector<1x96xf32>
    %29 = vector.broadcast %28 : vector<1x96xf32> to vector<8x96xf32>
    %30 = arith.addf %27, %29 : vector<8x96xf32>
    %31 = vector.extract_strided_slice %30 {offsets = [0, 0], sizes = [8, 32], strides = [1, 1]} : vector<8x96xf32> to vector<8x32xf32>
    %32 = vector.extract_strided_slice %30 {offsets = [0, 32], sizes = [8, 32], strides = [1, 1]} : vector<8x96xf32> to vector<8x32xf32>
    %33 = vector.extract_strided_slice %30 {offsets = [0, 64], sizes = [8, 32], strides = [1, 1]} : vector<8x96xf32> to vector<8x32xf32>
    %c0_15 = arith.constant 0 : index
    %c0_16 = arith.constant 0 : index
    %c0_17 = arith.constant 0 : index
    %34 = vector.load %arg2[%c0_15, %c0_16, %c0_17] : memref<1x8x8xf32, #tpu.memory_space<vmem>>, vector<1x8x8xf32>
    %35 = vector.shape_cast %34 : vector<1x8x8xf32> to vector<8x8xf32>
    %cst_18 = arith.constant 0.000000e+00 : f32
    %36 = vector.broadcast %cst_18 : f32 to vector<8x8xf32>
    %37 = arith.cmpf ogt, %35, %36 : vector<8x8xf32>
    %38 = vector.extract_strided_slice %31 {offsets = [0, 0], sizes = [8, 8], strides = [1, 1]} : vector<8x32xf32> to vector<8x8xf32>
    %39 = vector.extract_strided_slice %32 {offsets = [0, 0], sizes = [8, 8], strides = [1, 1]} : vector<8x32xf32> to vector<8x8xf32>
    %40 = vector.extract_strided_slice %33 {offsets = [0, 0], sizes = [8, 8], strides = [1, 1]} : vector<8x32xf32> to vector<8x8xf32>
    %cst_19 = arith.constant dense<0.000000e+00> : vector<8x8xf32>
    %41 = tpu.matmul %38, %39, %cst_19 {dimension_numbers = #tpu.dot_dimension_numbers<[1], [1], [0], [0], [0, 0, 1, 0], [], []>} : vector<8x8xf32>, vector<8x8xf32>, vector<8x8xf32> -> vector<8x8xf32>
    %cst_20 = arith.constant -9.99999984E+17 : f32
    %42 = vector.broadcast %cst_20 : f32 to vector<8x8xf32>
    %43 = arith.select %37, %42, %41 : vector<8x8xi1>, vector<8x8xf32>
    %cst_21 = arith.constant dense<0xFF800000> : vector<8xf32>
    %44 = vector.multi_reduction <maximumf>, %43, %cst_21 [1] : vector<8x8xf32> to vector<8xf32>
    %45 = vector.shape_cast %44 : vector<8xf32> to vector<8x1xf32>
    %46 = vector.broadcast %45 : vector<8x1xf32> to vector<8x8xf32>
    %47 = arith.subf %43, %46 : vector<8x8xf32>
    %48 = math.exp %47 : vector<8x8xf32>
    %cst_22 = arith.constant dense<0.000000e+00> : vector<8xf32>
    %49 = vector.multi_reduction <add>, %48, %cst_22 [1] : vector<8x8xf32> to vector<8xf32>
    %50 = vector.shape_cast %49 : vector<8xf32> to vector<8x1xf32>
    %51 = vector.broadcast %50 : vector<8x1xf32> to vector<8x8xf32>
    %52 = arith.divf %48, %51 : vector<8x8xf32>
    %cst_23 = arith.constant dense<0.000000e+00> : vector<8x8xf32>
    %53 = tpu.matmul %52, %40, %cst_23 {dimension_numbers = #tpu.dot_dimension_numbers<[1], [0], [0], [1], [0, 0, 1, 1], [], []>} : vector<8x8xf32>, vector<8x8xf32>, vector<8x8xf32> -> vector<8x8xf32>
    %54 = vector.extract_strided_slice %31 {offsets = [0, 8], sizes = [8, 8], strides = [1, 1]} : vector<8x32xf32> to vector<8x8xf32>
    %55 = vector.extract_strided_slice %32 {offsets = [0, 8], sizes = [8, 8], strides = [1, 1]} : vector<8x32xf32> to vector<8x8xf32>
    %56 = vector.extract_strided_slice %33 {offsets = [0, 8], sizes = [8, 8], strides = [1, 1]} : vector<8x32xf32> to vector<8x8xf32>
    %cst_24 = arith.constant dense<0.000000e+00> : vector<8x8xf32>
    %57 = tpu.matmul %54, %55, %cst_24 {dimension_numbers = #tpu.dot_dimension_numbers<[1], [1], [0], [0], [0, 0, 1, 0], [], []>} : vector<8x8xf32>, vector<8x8xf32>, vector<8x8xf32> -> vector<8x8xf32>
    %cst_25 = arith.constant -9.99999984E+17 : f32
    %58 = vector.broadcast %cst_25 : f32 to vector<8x8xf32>
    %59 = arith.select %37, %58, %57 : vector<8x8xi1>, vector<8x8xf32>
    %cst_26 = arith.constant dense<0xFF800000> : vector<8xf32>
    %60 = vector.multi_reduction <maximumf>, %59, %cst_26 [1] : vector<8x8xf32> to vector<8xf32>
    %61 = vector.shape_cast %60 : vector<8xf32> to vector<8x1xf32>
    %62 = vector.broadcast %61 : vector<8x1xf32> to vector<8x8xf32>
    %63 = arith.subf %59, %62 : vector<8x8xf32>
    %64 = math.exp %63 : vector<8x8xf32>
    %cst_27 = arith.constant dense<0.000000e+00> : vector<8xf32>
    %65 = vector.multi_reduction <add>, %64, %cst_27 [1] : vector<8x8xf32> to vector<8xf32>
    %66 = vector.shape_cast %65 : vector<8xf32> to vector<8x1xf32>
    %67 = vector.broadcast %66 : vector<8x1xf32> to vector<8x8xf32>
    %68 = arith.divf %64, %67 : vector<8x8xf32>
    %cst_28 = arith.constant dense<0.000000e+00> : vector<8x8xf32>
    %69 = tpu.matmul %68, %56, %cst_28 {dimension_numbers = #tpu.dot_dimension_numbers<[1], [0], [0], [1], [0, 0, 1, 1], [], []>} : vector<8x8xf32>, vector<8x8xf32>, vector<8x8xf32> -> vector<8x8xf32>
    %70 = vector.extract_strided_slice %31 {offsets = [0, 16], sizes = [8, 8], strides = [1, 1]} : vector<8x32xf32> to vector<8x8xf32>
    %71 = vector.extract_strided_slice %32 {offsets = [0, 16], sizes = [8, 8], strides = [1, 1]} : vector<8x32xf32> to vector<8x8xf32>
    %72 = vector.extract_strided_slice %33 {offsets = [0, 16], sizes = [8, 8], strides = [1, 1]} : vector<8x32xf32> to vector<8x8xf32>
    %cst_29 = arith.constant dense<0.000000e+00> : vector<8x8xf32>
    %73 = tpu.matmul %70, %71, %cst_29 {dimension_numbers = #tpu.dot_dimension_numbers<[1], [1], [0], [0], [0, 0, 1, 0], [], []>} : vector<8x8xf32>, vector<8x8xf32>, vector<8x8xf32> -> vector<8x8xf32>
    %cst_30 = arith.constant -9.99999984E+17 : f32
    %74 = vector.broadcast %cst_30 : f32 to vector<8x8xf32>
    %75 = arith.select %37, %74, %73 : vector<8x8xi1>, vector<8x8xf32>
    %cst_31 = arith.constant dense<0xFF800000> : vector<8xf32>
    %76 = vector.multi_reduction <maximumf>, %75, %cst_31 [1] : vector<8x8xf32> to vector<8xf32>
    %77 = vector.shape_cast %76 : vector<8xf32> to vector<8x1xf32>
    %78 = vector.broadcast %77 : vector<8x1xf32> to vector<8x8xf32>
    %79 = arith.subf %75, %78 : vector<8x8xf32>
    %80 = math.exp %79 : vector<8x8xf32>
    %cst_32 = arith.constant dense<0.000000e+00> : vector<8xf32>
    %81 = vector.multi_reduction <add>, %80, %cst_32 [1] : vector<8x8xf32> to vector<8xf32>
    %82 = vector.shape_cast %81 : vector<8xf32> to vector<8x1xf32>
    %83 = vector.broadcast %82 : vector<8x1xf32> to vector<8x8xf32>
    %84 = arith.divf %80, %83 : vector<8x8xf32>
    %cst_33 = arith.constant dense<0.000000e+00> : vector<8x8xf32>
    %85 = tpu.matmul %84, %72, %cst_33 {dimension_numbers = #tpu.dot_dimension_numbers<[1], [0], [0], [1], [0, 0, 1, 1], [], []>} : vector<8x8xf32>, vector<8x8xf32>, vector<8x8xf32> -> vector<8x8xf32>
    %86 = vector.extract_strided_slice %31 {offsets = [0, 24], sizes = [8, 8], strides = [1, 1]} : vector<8x32xf32> to vector<8x8xf32>
    %87 = vector.extract_strided_slice %32 {offsets = [0, 24], sizes = [8, 8], strides = [1, 1]} : vector<8x32xf32> to vector<8x8xf32>
    %88 = vector.extract_strided_slice %33 {offsets = [0, 24], sizes = [8, 8], strides = [1, 1]} : vector<8x32xf32> to vector<8x8xf32>
    %cst_34 = arith.constant dense<0.000000e+00> : vector<8x8xf32>
    %89 = tpu.matmul %86, %87, %cst_34 {dimension_numbers = #tpu.dot_dimension_numbers<[1], [1], [0], [0], [0, 0, 1, 0], [], []>} : vector<8x8xf32>, vector<8x8xf32>, vector<8x8xf32> -> vector<8x8xf32>
    %cst_35 = arith.constant -9.99999984E+17 : f32
    %90 = vector.broadcast %cst_35 : f32 to vector<8x8xf32>
    %91 = arith.select %37, %90, %89 : vector<8x8xi1>, vector<8x8xf32>
    %cst_36 = arith.constant dense<0xFF800000> : vector<8xf32>
    %92 = vector.multi_reduction <maximumf>, %91, %cst_36 [1] : vector<8x8xf32> to vector<8xf32>
    %93 = vector.shape_cast %92 : vector<8xf32> to vector<8x1xf32>
    %94 = vector.broadcast %93 : vector<8x1xf32> to vector<8x8xf32>
    %95 = arith.subf %91, %94 : vector<8x8xf32>
    %96 = math.exp %95 : vector<8x8xf32>
    %cst_37 = arith.constant dense<0.000000e+00> : vector<8xf32>
    %97 = vector.multi_reduction <add>, %96, %cst_37 [1] : vector<8x8xf32> to vector<8xf32>
    %98 = vector.shape_cast %97 : vector<8xf32> to vector<8x1xf32>
    %99 = vector.broadcast %98 : vector<8x1xf32> to vector<8x8xf32>
    %100 = arith.divf %96, %99 : vector<8x8xf32>
    %cst_38 = arith.constant dense<0.000000e+00> : vector<8x8xf32>
    %101 = tpu.matmul %100, %88, %cst_38 {dimension_numbers = #tpu.dot_dimension_numbers<[1], [0], [0], [1], [0, 0, 1, 1], [], []>} : vector<8x8xf32>, vector<8x8xf32>, vector<8x8xf32> -> vector<8x8xf32>
    %102 = tpu.concatenate %53, %69, %85, %101 in 1 : vector<8x8xf32>, vector<8x8xf32>, vector<8x8xf32>, vector<8x8xf32> -> vector<8x32xf32>
    %c0_39 = arith.constant 0 : index
    %c0_40 = arith.constant 0 : index
    %103 = vector.load %arg7[%c0_39, %c0_40] : memref<32x32xf32, #tpu.memory_space<vmem>>, vector<32x32xf32>
    %cst_41 = arith.constant dense<0.000000e+00> : vector<8x32xf32>
    %104 = tpu.matmul %102, %103, %cst_41 {dimension_numbers = #tpu.dot_dimension_numbers<[1], [0], [0], [1], [0, 0, 1, 1], [], []>} : vector<8x32xf32>, vector<32x32xf32>, vector<8x32xf32> -> vector<8x32xf32>
    %c0_42 = arith.constant 0 : index
    %c0_43 = arith.constant 0 : index
    %105 = vector.load %arg8[%c0_42, %c0_43] : memref<1x32xf32, #tpu.memory_space<vmem>>, vector<1x32xf32>
    %106 = vector.broadcast %105 : vector<1x32xf32> to vector<8x32xf32>
    %107 = arith.addf %104, %106 : vector<8x32xf32>
    %108 = arith.addf %107, %1 : vector<8x32xf32>
    %cst_44 = arith.constant dense<0.000000e+00> : vector<8xf32>
    %109 = vector.multi_reduction <add>, %108, %cst_44 [1] : vector<8x32xf32> to vector<8xf32>
    %110 = vector.shape_cast %109 : vector<8xf32> to vector<8x1xf32>
    %cst_45 = arith.constant 3.200000e+01 : f32
    %111 = vector.broadcast %cst_45 : f32 to vector<8x1xf32>
    %112 = arith.divf %110, %111 : vector<8x1xf32>
    %113 = vector.broadcast %112 : vector<8x1xf32> to vector<8x32xf32>
    %114 = arith.subf %108, %113 : vector<8x32xf32>
    %115 = arith.mulf %114, %114 : vector<8x32xf32>
    %cst_46 = arith.constant dense<0.000000e+00> : vector<8xf32>
    %116 = vector.multi_reduction <add>, %115, %cst_46 [1] : vector<8x32xf32> to vector<8xf32>
    %117 = vector.shape_cast %116 : vector<8xf32> to vector<8x1xf32>
    %cst_47 = arith.constant 3.200000e+01 : f32
    %118 = vector.broadcast %cst_47 : f32 to vector<8x1xf32>
    %119 = arith.divf %117, %118 : vector<8x1xf32>
    %120 = vector.broadcast %112 : vector<8x1xf32> to vector<8x32xf32>
    %121 = arith.subf %108, %120 : vector<8x32xf32>
    %cst_48 = arith.constant 9.99999997E-7 : f32
    %122 = vector.broadcast %cst_48 : f32 to vector<8x1xf32>
    %123 = arith.addf %119, %122 : vector<8x1xf32>
    %124 = math.rsqrt %123 : vector<8x1xf32>
    %125 = vector.broadcast %124 : vector<8x1xf32> to vector<8x32xf32>
    %126 = arith.mulf %121, %125 : vector<8x32xf32>
    %c0_49 = arith.constant 0 : index
    %c0_50 = arith.constant 0 : index
    %127 = vector.load %arg9[%c0_49, %c0_50] : memref<1x32xf32, #tpu.memory_space<vmem>>, vector<1x32xf32>
    %128 = vector.broadcast %127 : vector<1x32xf32> to vector<8x32xf32>
    %129 = arith.mulf %126, %128 : vector<8x32xf32>
    %c0_51 = arith.constant 0 : index
    %c0_52 = arith.constant 0 : index
    %130 = vector.load %arg10[%c0_51, %c0_52] : memref<1x32xf32, #tpu.memory_space<vmem>>, vector<1x32xf32>
    %131 = vector.broadcast %130 : vector<1x32xf32> to vector<8x32xf32>
    %132 = arith.addf %129, %131 : vector<8x32xf32>
    %c0_53 = arith.constant 0 : index
    %c0_54 = arith.constant 0 : index
    %133 = vector.load %arg11[%c0_53, %c0_54] : memref<32x64xf32, #tpu.memory_space<vmem>>, vector<32x64xf32>
    %cst_55 = arith.constant dense<0.000000e+00> : vector<8x64xf32>
    %134 = tpu.matmul %132, %133, %cst_55 {dimension_numbers = #tpu.dot_dimension_numbers<[1], [0], [0], [1], [0, 0, 1, 1], [], []>} : vector<8x32xf32>, vector<32x64xf32>, vector<8x64xf32> -> vector<8x64xf32>
    %c0_56 = arith.constant 0 : index
    %c0_57 = arith.constant 0 : index
    %135 = vector.load %arg12[%c0_56, %c0_57] : memref<1x64xf32, #tpu.memory_space<vmem>>, vector<1x64xf32>
    %136 = vector.broadcast %135 : vector<1x64xf32> to vector<8x64xf32>
    %137 = arith.addf %134, %136 : vector<8x64xf32>
    %cst_58 = arith.constant 5.000000e-01 : f32
    %138 = vector.broadcast %cst_58 : f32 to vector<8x64xf32>
    %139 = arith.mulf %138, %137 : vector<8x64xf32>
    %cst_59 = arith.constant 4.471500e-02 : f32
    %140 = vector.broadcast %cst_59 : f32 to vector<8x64xf32>
    %141 = arith.mulf %140, %137 : vector<8x64xf32>
    %142 = arith.mulf %141, %137 : vector<8x64xf32>
    %143 = arith.mulf %142, %137 : vector<8x64xf32>
    %144 = arith.addf %137, %143 : vector<8x64xf32>
    %cst_60 = arith.constant 0.797884583 : f32
    %145 = vector.broadcast %cst_60 : f32 to vector<8x64xf32>
    %146 = arith.mulf %145, %144 : vector<8x64xf32>
    %147 = math.tanh %146 : vector<8x64xf32>
    %cst_61 = arith.constant 1.000000e+00 : f32
    %148 = vector.broadcast %cst_61 : f32 to vector<8x64xf32>
    %149 = arith.addf %148, %147 : vector<8x64xf32>
    %150 = arith.mulf %139, %149 : vector<8x64xf32>
    %c0_62 = arith.constant 0 : index
    %c0_63 = arith.constant 0 : index
    %151 = vector.load %arg13[%c0_62, %c0_63] : memref<64x32xf32, #tpu.memory_space<vmem>>, vector<64x32xf32>
    %cst_64 = arith.constant dense<0.000000e+00> : vector<8x32xf32>
    %152 = tpu.matmul %150, %151, %cst_64 {dimension_numbers = #tpu.dot_dimension_numbers<[1], [0], [0], [1], [0, 0, 1, 1], [], []>} : vector<8x64xf32>, vector<64x32xf32>, vector<8x32xf32> -> vector<8x32xf32>
    %c0_65 = arith.constant 0 : index
    %c0_66 = arith.constant 0 : index
    %153 = vector.load %arg14[%c0_65, %c0_66] : memref<1x32xf32, #tpu.memory_space<vmem>>, vector<1x32xf32>
    %154 = vector.broadcast %153 : vector<1x32xf32> to vector<8x32xf32>
    %155 = arith.addf %152, %154 : vector<8x32xf32>
    %156 = arith.addf %155, %108 : vector<8x32xf32>
    %c0_67 = arith.constant 0 : index
    %c0_68 = arith.constant 0 : index
    %c0_69 = arith.constant 0 : index
    %157 = vector.load %arg15[%c0_67, %c0_68, %c0_69] : memref<1x8x32xf32, #tpu.memory_space<vmem>>, vector<1x8x32xf32>
    %158 = vector.shape_cast %157 : vector<1x8x32xf32> to vector<8x32xf32>
    %159 = vector.shape_cast %156 : vector<8x32xf32> to vector<1x8x32xf32>
    tpu.vector_store %arg15[%c0_67, %c0_68, %c0_69], %159 {strides = array<i32>} : memref<1x8x32xf32, #tpu.memory_space<vmem>>, vector<1x8x32xf32>,
    return
  }
  func.func @transform_0(%arg0: i32) -> (i32, i32, i32) {
    %c0_i32 = arith.constant 0 : i32
    %c0_i32_0 = arith.constant 0 : i32
    %c0_i32_1 = arith.constant 0 : i32
    return %arg0, %c0_i32, %c0_i32_0 : i32, i32, i32
  }
  func.func @transform_1(%arg0: i32) -> (i32, i32, i32) {
    %c0_i32 = arith.constant 0 : i32
    %c0_i32_0 = arith.constant 0 : i32
    %c0_i32_1 = arith.constant 0 : i32
    return %arg0, %c0_i32, %c0_i32_0 : i32, i32, i32
  }
  func.func @transform_2(%arg0: i32) -> (i32, i32) {
    %c0_i32 = arith.constant 0 : i32
    %c0_i32_0 = arith.constant 0 : i32
    %c0_i32_1 = arith.constant 0 : i32
    return %c0_i32, %c0_i32_0 : i32, i32
  }
  func.func @transform_3(%arg0: i32) -> (i32, i32) {
    %c0_i32 = arith.constant 0 : i32
    %c0_i32_0 = arith.constant 0 : i32
    %c0_i32_1 = arith.constant 0 : i32
    return %c0_i32, %c0_i32_0 : i32, i32
  }
  func.func @transform_4(%arg0: i32) -> (i32, i32) {
    %c0_i32 = arith.constant 0 : i32
    %c0_i32_0 = arith.constant 0 : i32
    %c0_i32_1 = arith.constant 0 : i32
    return %c0_i32, %c0_i32_0 : i32, i32
  }
  func.func @transform_5(%arg0: i32) -> (i32, i32) {
    %c0_i32 = arith.constant 0 : i32
    %c0_i32_0 = arith.constant 0 : i32
    %c0_i32_1 = arith.constant 0 : i32
    return %c0_i32, %c0_i32_0 : i32, i32
  }
  func.func @transform_6(%arg0: i32) -> (i32, i32) {
    %c0_i32 = arith.constant 0 : i32
    %c0_i32_0 = arith.constant 0 : i32
    %c0_i32_1 = arith.constant 0 : i32
    return %c0_i32, %c0_i32_0 : i32, i32
  }
  func.func @transform_7(%arg0: i32) -> (i32, i32) {
    %c0_i32 = arith.constant 0 : i32
    %c0_i32_0 = arith.constant 0 : i32
    %c0_i32_1 = arith.constant 0 : i32
    return %c0_i32, %c0_i32_0 : i32, i32
  }
  func.func @transform_8(%arg0: i32) -> (i32, i32) {
    %c0_i32 = arith.constant 0 : i32
    %c0_i32_0 = arith.constant 0 : i32
    %c0_i32_1 = arith.constant 0 : i32
    return %c0_i32, %c0_i32_0 : i32, i32
  }
  func.func @transform_9(%arg0: i32) -> (i32, i32) {
    %c0_i32 = arith.constant 0 : i32
    %c0_i32_0 = arith.constant 0 : i32
    %c0_i32_1 = arith.constant 0 : i32
    return %c0_i32, %c0_i32_0 : i32, i32
  }
  func.func @transform_10(%arg0: i32) -> (i32, i32) {
    %c0_i32 = arith.constant 0 : i32
    %c0_i32_0 = arith.constant 0 : i32
    %c0_i32_1 = arith.constant 0 : i32
    return %c0_i32, %c0_i32_0 : i32, i32
  }
  func.func @transform_11(%arg0: i32) -> (i32, i32) {
    %c0_i32 = arith.constant 0 : i32
    %c0_i32_0 = arith.constant 0 : i32
    %c0_i32_1 = arith.constant 0 : i32
    return %c0_i32, %c0_i32_0 : i32, i32
  }
  func.func @transform_12(%arg0: i32) -> (i32, i32) {
    %c0_i32 = arith.constant 0 : i32
    %c0_i32_0 = arith.constant 0 : i32
    %c0_i32_1 = arith.constant 0 : i32
    return %c0_i32, %c0_i32_0 : i32, i32
  }
  func.func @transform_13(%arg0: i32) -> (i32, i32) {
    %c0_i32 = arith.constant 0 : i32
    %c0_i32_0 = arith.constant 0 : i32
    %c0_i32_1 = arith.constant 0 : i32
    return %c0_i32, %c0_i32_0 : i32, i32
  }
  func.func @transform_14(%arg0: i32) -> (i32, i32, i32) {
    %c0_i32 = arith.constant 0 : i32
    %c0_i32_0 = arith.constant 0 : i32
    %c0_i32_1 = arith.constant 0 : i32
    return %arg0, %c0_i32, %c0_i32_0 : i32, i32, i32
  }
}

</mosaic_0001>

<llo_original>
// kernel: tpu_custom_call.1
$region0: #{tpu_custom_call.1}
  #allocation0 [shape = 'u32[]', space=smem, size = 0x4, offset = 0x4, fixed_abs, tag = 'smem constant byte address 0x4 - core index']
  #allocation1 [shape = 'u32[144,128]{1,0:T(1,128)}', space=vmem, size = 0x12000, scoped, tag = 'internal scratch']
  %s0 = inlined_call_operand.hbm [shape: f32[2,8,32], index: 0, kind: input, shape index: {}]
  %s1 = inlined_call_operand.hbm [shape: f32[2,8,8], index: 1, kind: input, shape index: {}]
  %s2 = inlined_call_operand.vmem [shape: f32[1,32], index: 2, kind: input, shape index: {}]
  %s3 = inlined_call_operand.vmem [shape: f32[1,32], index: 3, kind: input, shape index: {}]
  %s4 = inlined_call_operand.vmem [shape: f32[32,96], index: 4, kind: input, shape index: {}]
  %s5 = inlined_call_operand.vmem [shape: f32[1,96], index: 5, kind: input, shape index: {}]
  %s6 = inlined_call_operand.vmem [shape: f32[32,32], index: 6, kind: input, shape index: {}]
  %s7 = inlined_call_operand.vmem [shape: f32[1,32], index: 7, kind: input, shape index: {}]
  %s8 = inlined_call_operand.vmem [shape: f32[1,32], index: 8, kind: input, shape index: {}]
  %s9 = inlined_call_operand.vmem [shape: f32[1,32], index: 9, kind: input, shape index: {}]
  %s10 = inlined_call_operand.vmem [shape: f32[32,64], index: 10, kind: input, shape index: {}]
  %s11 = inlined_call_operand.vmem [shape: f32[1,64], index: 11, kind: input, shape index: {}]
  %s12 = inlined_call_operand.vmem [shape: f32[64,32], index: 12, kind: input, shape index: {}]
  %s13 = inlined_call_operand.vmem [shape: f32[1,32], index: 13, kind: input, shape index: {}]
  %s14 = inlined_call_operand.hbm [shape: f32[2,8,32], index: 14, kind: output, shape index: {}]
  %s15 = sld [smem:[#allocation0]]
  $region97: #{tpu_custom_call.1} parent=0
    _
  %s17 = ssub.s32 1, %s15
  %s18 = scalar_select 0, %s17, %s15
  $region1: #{tpu_custom_call.1} parent=0
    #allocation2 [shape = 'u8[8192]{0}', space=vmem, size = 0x2000, scoped, tag = 'input window, operand 0']
    #allocation3 [shape = 's32[2]{0}', space=sflag, size = 0x8, scoped, tag = 'scoped memory for tpu_custom_call.1']
    #allocation4 [shape = 's32[2]{0}', space=sflag, size = 0x8, scoped, tag = 'scoped memory for tpu_custom_call.1']
    #allocation5 [shape = 'u8[8192]{0}', space=vmem, size = 0x2000, scoped, tag = 'input window, operand 1']
    #allocation6 [shape = 's32[2]{0}', space=sflag, size = 0x8, scoped, tag = 'scoped memory for tpu_custom_call.1']
    #allocation7 [shape = 'u8[8192]{0}', space=vmem, size = 0x2000, scoped, tag = 'output window, operand 0']
    %19 = vsyncpa [#allocation3], 0
    %s20 = scalar_lea.sflag [#allocation3], 1
    %21 = vsyncpa %s20, 0
    %22 = vsyncpa [#allocation6], 0
    %s23 = scalar_lea.sflag [#allocation6], 1
    %24 = vsyncpa %s23, 0
    %25 = vsyncpa [#allocation4], 0
    %s26 = scalar_lea.sflag [#allocation4], 1
    %27 = vsyncpa %s26, 0
    loop: start=0, step=1, limit=4
    $region2: #{tpu_custom_call.1} parent=1 // loop_pre_header
      _
    $region3: #{tpu_custom_call.1} parent=1 // loop_header
      %s29 = sphi 0, %s33
      %p30 = scmp.ge.s32.totalorder %s29, 4
      %s39 = sphi 0, %s41
      %s42 = sphi 0, %s39
      %s43 = sphi 0, %s42
      %s59 = sphi 0, %s43
      %s65 = sphi 0, %s67
      %s68 = sphi 0, %s65
      %s69 = sphi 0, %s68
      %s85 = sphi 0, %s69
      %s89 = sphi 0, %s89
      %s91 = sphi 0, %s89
      %s92 = sphi 0, %s91
      %s106 = sphi 0, %s92
      %s110 = sphi 0, %s110
      %s112 = sphi 0, %s110
      %s113 = sphi 0, %s112
      %s127 = sphi 0, %s113
      %s131 = sphi 0, %s131
      %s133 = sphi 0, %s131
      %s134 = sphi 0, %s133
      %s148 = sphi 0, %s134
      %s152 = sphi 0, %s152
      %s154 = sphi 0, %s152
      %s155 = sphi 0, %s154
      %s169 = sphi 0, %s155
      %s173 = sphi 0, %s173
      %s175 = sphi 0, %s173
      %s176 = sphi 0, %s175
      %s190 = sphi 0, %s176
      %s194 = sphi 0, %s194
      %s196 = sphi 0, %s194
      %s197 = sphi 0, %s196
      %s211 = sphi 0, %s197
      %s215 = sphi 0, %s215
      %s217 = sphi 0, %s215
      %s218 = sphi 0, %s217
      %s232 = sphi 0, %s218
      %s236 = sphi 0, %s236
      %s238 = sphi 0, %s236
      %s239 = sphi 0, %s238
      %s253 = sphi 0, %s239
      %s257 = sphi 0, %s257
      %s259 = sphi 0, %s257
      %s260 = sphi 0, %s259
      %s274 = sphi 0, %s260
      %s278 = sphi 0, %s278
      %s280 = sphi 0, %s278
      %s281 = sphi 0, %s280
      %s295 = sphi 0, %s281
      %s299 = sphi 0, %s299
      %s301 = sphi 0, %s299
      %s302 = sphi 0, %s301
      %s316 = sphi 0, %s302
      %s320 = sphi 0, %s320
      %s322 = sphi 0, %s320
      %s323 = sphi 0, %s322
      %s337 = sphi 0, %s323
      %s343 = sphi 0, %s345
      %s346 = sphi 0, %s343
      %s347 = sphi 0, %s346
      %s363 = sphi 0, %s347
    $region4: #{tpu_custom_call.1} parent=1 // loop_header_branch
      %32 = sbr.rel (%p30) target = $region8
    $region5: #{tpu_custom_call.1} parent=1 // loop_body
      %s34 = ssub.s32 %s29, 1
      %s35 = ssub.s32 %s29, 2
      %s36 = sadd.s32 %s29, 1
      %s37 = ssub.s32 %s29, %s36
      %p38 = scmp.eq.s32.totalorder %s37, 0
      %s40 = sadd.s32 %s39, 1
      %s41 = scalar_select %p38, %s39, %s40
      %p44 = pneg %p38
      %p45 = scmp.eq.s32.totalorder %s29, 1
      %p46 = por %p44, %p45
      %p47 = scmp.ne.s32.totalorder %s39, %s42
      %p48 = scmp.eq.s32.totalorder %s29, 0
      %p49 = por %p47, %p48
      %p50 = scmp.ne.s32.totalorder %s39, %s42
      %p51 = scmp.eq.s32.totalorder %s34, 1
      %p52 = por %p50, %p51
      %p53 = scmp.ne.s32.totalorder %s42, %s43
      %p54 = scmp.eq.s32.totalorder %s34, 0
      %p55 = por %p53, %p54
      %p56 = scmp.ne.s32.totalorder %s42, %s43
      %p57 = scmp.eq.s32.totalorder %s35, 1
      %p58 = por %p56, %p57
      %p60 = scmp.ne.s32.totalorder %s43, %s59
      %p61 = scmp.eq.s32.totalorder %s35, 0
      %p62 = por %p60, %p61
      %s63 = ssub.s32 %s29, %s36
      %p64 = scmp.eq.s32.totalorder %s63, 0
      %s66 = sadd.s32 %s65, 1
      %s67 = scalar_select %p64, %s65, %s66
      %p70 = pneg %p64
      %p71 = scmp.eq.s32.totalorder %s29, 1
      %p72 = por %p70, %p71
      %p73 = scmp.ne.s32.totalorder %s65, %s68
      %p74 = scmp.eq.s32.totalorder %s29, 0
      %p75 = por %p73, %p74
      %p76 = scmp.ne.s32.totalorder %s65, %s68
      %p77 = scmp.eq.s32.totalorder %s34, 1
      %p78 = por %p76, %p77
      %p79 = scmp.ne.s32.totalorder %s68, %s69
      %p80 = scmp.eq.s32.totalorder %s34, 0
      %p81 = por %p79, %p80
      %p82 = scmp.ne.s32.totalorder %s68, %s69
      %p83 = scmp.eq.s32.totalorder %s35, 1
      %p84 = por %p82, %p83
      %p86 = scmp.ne.s32.totalorder %s69, %s85
      %p87 = scmp.eq.s32.totalorder %s35, 0
      %p88 = por %p86, %p87
      %s90 = sadd.s32 %s89, 1
      %p93 = scmp.eq.s32.totalorder %s29, 1
      %p94 = scmp.ne.s32.totalorder %s89, %s91
      %p95 = scmp.eq.s32.totalorder %s29, 0
      %p96 = por %p94, %p95
      %p97 = scmp.ne.s32.totalorder %s89, %s91
      %p98 = scmp.eq.s32.totalorder %s34, 1
      %p99 = por %p97, %p98
      %p100 = scmp.ne.s32.totalorder %s91, %s92
      %p101 = scmp.eq.s32.totalorder %s34, 0
      %p102 = por %p100, %p101
      %p103 = scmp.ne.s32.totalorder %s91, %s92
      %p104 = scmp.eq.s32.totalorder %s35, 1
      %p105 = por %p103, %p104
      %p107 = scmp.ne.s32.totalorder %s92, %s106
      %p108 = scmp.eq.s32.totalorder %s35, 0
      %p109 = por %p107, %p108
      %s111 = sadd.s32 %s110, 1
      %p114 = scmp.eq.s32.totalorder %s29, 1
      %p115 = scmp.ne.s32.totalorder %s110, %s112
      %p116 = scmp.eq.s32.totalorder %s29, 0
      %p117 = por %p115, %p116
      %p118 = scmp.ne.s32.totalorder %s110, %s112
      %p119 = scmp.eq.s32.totalorder %s34, 1
      %p120 = por %p118, %p119
      %p121 = scmp.ne.s32.totalorder %s112, %s113
      %p122 = scmp.eq.s32.totalorder %s34, 0
      %p123 = por %p121, %p122
      %p124 = scmp.ne.s32.totalorder %s112, %s113
      %p125 = scmp.eq.s32.totalorder %s35, 1
      %p126 = por %p124, %p125
      %p128 = scmp.ne.s32.totalorder %s113, %s127
      %p129 = scmp.eq.s32.totalorder %s35, 0
      %p130 = por %p128, %p129
      %s132 = sadd.s32 %s131, 1
      %p135 = scmp.eq.s32.totalorder %s29, 1
      %p136 = scmp.ne.s32.totalorder %s131, %s133
      %p137 = scmp.eq.s32.totalorder %s29, 0
      %p138 = por %p136, %p137
      %p139 = scmp.ne.s32.totalorder %s131, %s133
      %p140 = scmp.eq.s32.totalorder %s34, 1
      %p141 = por %p139, %p140
      %p142 = scmp.ne.s32.totalorder %s133, %s134
      %p143 = scmp.eq.s32.totalorder %s34, 0
      %p144 = por %p142, %p143
      %p145 = scmp.ne.s32.totalorder %s133, %s134
      %p146 = scmp.eq.s32.totalorder %s35, 1
      %p147 = por %p145, %p146
      %p149 = scmp.ne.s32.totalorder %s134, %s148
      %p150 = scmp.eq.s32.totalorder %s35, 0
      %p151 = por %p149, %p150
      %s153 = sadd.s32 %s152, 1
      %p156 = scmp.eq.s32.totalorder %s29, 1
      %p157 = scmp.ne.s32.totalorder %s152, %s154
      %p158 = scmp.eq.s32.totalorder %s29, 0
      %p159 = por %p157, %p158
      %p160 = scmp.ne.s32.totalorder %s152, %s154
      %p161 = scmp.eq.s32.totalorder %s34, 1
      %p162 = por %p160, %p161
      %p163 = scmp.ne.s32.totalorder %s154, %s155
      %p164 = scmp.eq.s32.totalorder %s34, 0
      %p165 = por %p163, %p164
      %p166 = scmp.ne.s32.totalorder %s154, %s155
      %p167 = scmp.eq.s32.totalorder %s35, 1
      %p168 = por %p166, %p167
      %p170 = scmp.ne.s32.totalorder %s155, %s169
      %p171 = scmp.eq.s32.totalorder %s35, 0
      %p172 = por %p170, %p171
      %s174 = sadd.s32 %s173, 1
      %p177 = scmp.eq.s32.totalorder %s29, 1
      %p178 = scmp.ne.s32.totalorder %s173, %s175
      %p179 = scmp.eq.s32.totalorder %s29, 0
      %p180 = por %p178, %p179
      %p181 = scmp.ne.s32.totalorder %s173, %s175
      %p182 = scmp.eq.s32.totalorder %s34, 1
      %p183 = por %p181, %p182
      %p184 = scmp.ne.s32.totalorder %s175, %s176
      %p185 = scmp.eq.s32.totalorder %s34, 0
      %p186 = por %p184, %p185
      %p187 = scmp.ne.s32.totalorder %s175, %s176
      %p188 = scmp.eq.s32.totalorder %s35, 1
      %p189 = por %p187, %p188
      %p191 = scmp.ne.s32.totalorder %s176, %s190
      %p192 = scmp.eq.s32.totalorder %s35, 0
      %p193 = por %p191, %p192
      %s195 = sadd.s32 %s194, 1
      %p198 = scmp.eq.s32.totalorder %s29, 1
      %p199 = scmp.ne.s32.totalorder %s194, %s196
      %p200 = scmp.eq.s32.totalorder %s29, 0
      %p201 = por %p199, %p200
      %p202 = scmp.ne.s32.totalorder %s194, %s196
      %p203 = scmp.eq.s32.totalorder %s34, 1
      %p204 = por %p202, %p203
      %p205 = scmp.ne.s32.totalorder %s196, %s197
      %p206 = scmp.eq.s32.totalorder %s34, 0
      %p207 = por %p205, %p206
      %p208 = scmp.ne.s32.totalorder %s196, %s197
      %p209 = scmp.eq.s32.totalorder %s35, 1
      %p210 = por %p208, %p209
      %p212 = scmp.ne.s32.totalorder %s197, %s211
      %p213 = scmp.eq.s32.totalorder %s35, 0
      %p214 = por %p212, %p213
      %s216 = sadd.s32 %s215, 1
      %p219 = scmp.eq.s32.totalorder %s29, 1
      %p220 = scmp.ne.s32.totalorder %s215, %s217
      %p221 = scmp.eq.s32.totalorder %s29, 0
      %p222 = por %p220, %p221
      %p223 = scmp.ne.s32.totalorder %s215, %s217
      %p224 = scmp.eq.s32.totalorder %s34, 1
      %p225 = por %p223, %p224
      %p226 = scmp.ne.s32.totalorder %s217, %s218
      %p227 = scmp.eq.s32.totalorder %s34, 0
      %p228 = por %p226, %p227
      %p229 = scmp.ne.s32.totalorder %s217, %s218
      %p230 = scmp.eq.s32.totalorder %s35, 1
      %p231 = por %p229, %p230
      %p233 = scmp.ne.s32.totalorder %s218, %s232
      %p234 = scmp.eq.s32.totalorder %s35, 0
      %p235 = por %p233, %p234
      %s237 = sadd.s32 %s236, 1
      %p240 = scmp.eq.s32.totalorder %s29, 1
      %p241 = scmp.ne.s32.totalorder %s236, %s238
      %p242 = scmp.eq.s32.totalorder %s29, 0
      %p243 = por %p241, %p242
      %p244 = scmp.ne.s32.totalorder %s236, %s238
      %p245 = scmp.eq.s32.totalorder %s34, 1
      %p246 = por %p244, %p245
      %p247 = scmp.ne.s32.totalorder %s238, %s239
      %p248 = scmp.eq.s32.totalorder %s34, 0
      %p249 = por %p247, %p248
      %p250 = scmp.ne.s32.totalorder %s238, %s239
      %p251 = scmp.eq.s32.totalorder %s35, 1
      %p252 = por %p250, %p251
      %p254 = scmp.ne.s32.totalorder %s239, %s253
      %p255 = scmp.eq.s32.totalorder %s35, 0
      %p256 = por %p254, %p255
      %s258 = sadd.s32 %s257, 1
      %p261 = scmp.eq.s32.totalorder %s29, 1
      %p262 = scmp.ne.s32.totalorder %s257, %s259
      %p263 = scmp.eq.s32.totalorder %s29, 0
      %p264 = por %p262, %p263
      %p265 = scmp.ne.s32.totalorder %s257, %s259
      %p266 = scmp.eq.s32.totalorder %s34, 1
      %p267 = por %p265, %p266
      %p268 = scmp.ne.s32.totalorder %s259, %s260
      %p269 = scmp.eq.s32.totalorder %s34, 0
      %p270 = por %p268, %p269
      %p271 = scmp.ne.s32.totalorder %s259, %s260
      %p272 = scmp.eq.s32.totalorder %s35, 1
      %p273 = por %p271, %p272
      %p275 = scmp.ne.s32.totalorder %s260, %s274
      %p276 = scmp.eq.s32.totalorder %s35, 0
      %p277 = por %p275, %p276
      %s279 = sadd.s32 %s278, 1
      %p282 = scmp.eq.s32.totalorder %s29, 1
      %p283 = scmp.ne.s32.totalorder %s278, %s280
      %p284 = scmp.eq.s32.totalorder %s29, 0
      %p285 = por %p283, %p284
      %p286 = scmp.ne.s32.totalorder %s278, %s280
      %p287 = scmp.eq.s32.totalorder %s34, 1
      %p288 = por %p286, %p287
      %p289 = scmp.ne.s32.totalorder %s280, %s281
      %p290 = scmp.eq.s32.totalorder %s34, 0
      %p291 = por %p289, %p290
      %p292 = scmp.ne.s32.totalorder %s280, %s281
      %p293 = scmp.eq.s32.totalorder %s35, 1
      %p294 = por %p292, %p293
      %p296 = scmp.ne.s32.totalorder %s281, %s295
      %p297 = scmp.eq.s32.totalorder %s35, 0
      %p298 = por %p296, %p297
      %s300 = sadd.s32 %s299, 1
      %p303 = scmp.eq.s32.totalorder %s29, 1
      %p304 = scmp.ne.s32.totalorder %s299, %s301
      %p305 = scmp.eq.s32.totalorder %s29, 0
      %p306 = por %p304, %p305
      %p307 = scmp.ne.s32.totalorder %s299, %s301
      %p308 = scmp.eq.s32.totalorder %s34, 1
      %p309 = por %p307, %p308
      %p310 = scmp.ne.s32.totalorder %s301, %s302
      %p311 = scmp.eq.s32.totalorder %s34, 0
      %p312 = por %p310, %p311
      %p313 = scmp.ne.s32.totalorder %s301, %s302
      %p314 = scmp.eq.s32.totalorder %s35, 1
      %p315 = por %p313, %p314
      %p317 = scmp.ne.s32.totalorder %s302, %s316
      %p318 = scmp.eq.s32.totalorder %s35, 0
      %p319 = por %p317, %p318
      %s321 = sadd.s32 %s320, 1
      %p324 = scmp.eq.s32.totalorder %s29, 1
      %p325 = scmp.ne.s32.totalorder %s320, %s322
      %p326 = scmp.eq.s32.totalorder %s29, 0
      %p327 = por %p325, %p326
      %p328 = scmp.ne.s32.totalorder %s320, %s322
      %p329 = scmp.eq.s32.totalorder %s34, 1
      %p330 = por %p328, %p329
      %p331 = scmp.ne.s32.totalorder %s322, %s323
      %p332 = scmp.eq.s32.totalorder %s34, 0
      %p333 = por %p331, %p332
      %p334 = scmp.ne.s32.totalorder %s322, %s323
      %p335 = scmp.eq.s32.totalorder %s35, 1
      %p336 = por %p334, %p335
      %p338 = scmp.ne.s32.totalorder %s323, %s337
      %p339 = scmp.eq.s32.totalorder %s35, 0
      %p340 = por %p338, %p339
      %s341 = ssub.s32 %s29, %s36
      %p342 = scmp.eq.s32.totalorder %s341, 0
      %s344 = sadd.s32 %s343, 1
      %s345 = scalar_select %p342, %s343, %s344
      %p348 = pneg %p342
      %p349 = scmp.eq.s32.totalorder %s29, 1
      %p350 = por %p348, %p349
      %p351 = scmp.ne.s32.totalorder %s343, %s346
      %p352 = scmp.eq.s32.totalorder %s29, 0
      %p353 = por %p351, %p352
      %p354 = scmp.ne.s32.totalorder %s343, %s346
      %p355 = scmp.eq.s32.totalorder %s34, 1
      %p356 = por %p354, %p355
      %p357 = scmp.ne.s32.totalorder %s346, %s347
      %p358 = scmp.eq.s32.totalorder %s34, 0
      %p359 = por %p357, %p358
      %p360 = scmp.ne.s32.totalorder %s346, %s347
      %p361 = scmp.eq.s32.totalorder %s35, 1
      %p362 = por %p360, %p361
      %p364 = scmp.ne.s32.totalorder %s347, %s363
      %p365 = scmp.eq.s32.totalorder %s35, 0
      %p366 = por %p364, %p365
      %p367 = scmp.le.s32.totalorder 1, %s29
      %p368 = scmp.lt.s32.totalorder %s29, 3
      %p369 = pnand %p367, %p368
      %p370 = pneg %p369
      // Predicated region
      $region9: #{tpu_custom_call.1} parent=5 // pred_check
        _
      $region10: #{tpu_custom_call.1} parent=5 // pred_check_branch
        %372 = sbr.rel (%p369) target = $region12
      $region11: #{tpu_custom_call.1} parent=5 // pred_region
        %s373 = ssub.s32 %s29, 1
        // Predicated region
        $region13: #{tpu_custom_call.1} parent=11 // pred_check
          %p374 = pneg %p102
        $region14: #{tpu_custom_call.1} parent=11 // pred_check_branch
          %376 = sbr.rel (%p374) target = $region16
        $region15: #{tpu_custom_call.1} parent=11 // pred_region
          _
        $region16: #{tpu_custom_call.1} parent=11 // pred_fallthru
          _
        // Predicated region
        $region17: #{tpu_custom_call.1} parent=11 // pred_check
          %p377 = pneg %p123
        $region18: #{tpu_custom_call.1} parent=11 // pred_check_branch
          %379 = sbr.rel (%p377) target = $region20
        $region19: #{tpu_custom_call.1} parent=11 // pred_region
          _
        $region20: #{tpu_custom_call.1} parent=11 // pred_fallthru
          _
        // Predicated region
        $region21: #{tpu_custom_call.1} parent=11 // pred_check
          %p380 = pneg %p144
        $region22: #{tpu_custom_call.1} parent=11 // pred_check_branch
          %382 = sbr.rel (%p380) target = $region24
        $region23: #{tpu_custom_call.1} parent=11 // pred_region
          _
        $region24: #{tpu_custom_call.1} parent=11 // pred_fallthru
          _
        // Predicated region
        $region25: #{tpu_custom_call.1} parent=11 // pred_check
          %p383 = pneg %p165
        $region26: #{tpu_custom_call.1} parent=11 // pred_check_branch
          %385 = sbr.rel (%p383) target = $region28
        $region27: #{tpu_custom_call.1} parent=11 // pred_region
          _
        $region28: #{tpu_custom_call.1} parent=11 // pred_fallthru
          _
        // Predicated region
        $region29: #{tpu_custom_call.1} parent=11 // pred_check
          %p386 = pneg %p186
        $region30: #{tpu_custom_call.1} parent=11 // pred_check_branch
          %388 = sbr.rel (%p386) target = $region32
        $region31: #{tpu_custom_call.1} parent=11 // pred_region
          _
        $region32: #{tpu_custom_call.1} parent=11 // pred_fallthru
          _
        // Predicated region
        $region33: #{tpu_custom_call.1} parent=11 // pred_check
          %p389 = pneg %p207
        $region34: #{tpu_custom_call.1} parent=11 // pred_check_branch
          %391 = sbr.rel (%p389) target = $region36
        $region35: #{tpu_custom_call.1} parent=11 // pred_region
          _
        $region36: #{tpu_custom_call.1} parent=11 // pred_fallthru
          _
        // Predicated region
        $region37: #{tpu_custom_call.1} parent=11 // pred_check
          %p392 = pneg %p228
        $region38: #{tpu_custom_call.1} parent=11 // pred_check_branch
          %394 = sbr.rel (%p392) target = $region40
        $region39: #{tpu_custom_call.1} parent=11 // pred_region
          _
        $region40: #{tpu_custom_call.1} parent=11 // pred_fallthru
          _
        // Predicated region
        $region41: #{tpu_custom_call.1} parent=11 // pred_check
          %p395 = pneg %p249
        $region42: #{tpu_custom_call.1} parent=11 // pred_check_branch
          %397 = sbr.rel (%p395) target = $region44
        $region43: #{tpu_custom_call.1} parent=11 // pred_region
          _
        $region44: #{tpu_custom_call.1} parent=11 // pred_fallthru
          _
        // Predicated region
        $region45: #{tpu_custom_call.1} parent=11 // pred_check
          %p398 = pneg %p270
        $region46: #{tpu_custom_call.1} parent=11 // pred_check_branch
          %400 = sbr.rel (%p398) target = $region48
        $region47: #{tpu_custom_call.1} parent=11 // pred_region
          _
        $region48: #{tpu_custom_call.1} parent=11 // pred_fallthru
          _
        // Predicated region
        $region49: #{tpu_custom_call.1} parent=11 // pred_check
          %p401 = pneg %p291
        $region50: #{tpu_custom_call.1} parent=11 // pred_check_branch
          %403 = sbr.rel (%p401) target = $region52
        $region51: #{tpu_custom_call.1} parent=11 // pred_region
          _
        $region52: #{tpu_custom_call.1} parent=11 // pred_fallthru
          _
        // Predicated region
        $region53: #{tpu_custom_call.1} parent=11 // pred_check
          %p404 = pneg %p312
        $region54: #{tpu_custom_call.1} parent=11 // pred_check_branch
          %406 = sbr.rel (%p404) target = $region56
        $region55: #{tpu_custom_call.1} parent=11 // pred_region
          _
        $region56: #{tpu_custom_call.1} parent=11 // pred_fallthru
          _
        // Predicated region
        $region57: #{tpu_custom_call.1} parent=11 // pred_check
          %p407 = pneg %p333
        $region58: #{tpu_custom_call.1} parent=11 // pred_check_branch
          %409 = sbr.rel (%p407) target = $region60
        $region59: #{tpu_custom_call.1} parent=11 // pred_region
          _
        $region60: #{tpu_custom_call.1} parent=11 // pred_fallthru
          _
      $region12: #{tpu_custom_call.1} parent=5 // pred_fallthru
        _
      %p410 = scmp.lt.s32.totalorder %s29, 2
      // Predicated region
      $region61: #{tpu_custom_call.1} parent=5 // pred_check
        %p411 = pneg %p410
      $region62: #{tpu_custom_call.1} parent=5 // pred_check_branch
        %413 = sbr.rel (%p411) target = $region64
      $region63: #{tpu_custom_call.1} parent=5 // pred_region
        // Predicated region
        $region65: #{tpu_custom_call.1} parent=63 // pred_check
          %p414 = pneg %p49
        $region66: #{tpu_custom_call.1} parent=63 // pred_check_branch
          %416 = sbr.rel (%p414) target = $region68
        $region67: #{tpu_custom_call.1} parent=63 // pred_region
          %s417 = sand.u32 %s39, 1
          %s418 = scalar_lea.sflag [#allocation3], %s417
          %s419 = sand.u32 %s39, 1
          %s420 = smul.addr %s419, 8
          %s421 = scalar_lea.vmem [#allocation2], %s420
          %s423 = ssub.s32 128, 128
          %424 = vsyncadd %s418, %s423
          %s425 = smul.addr %s29, 128
          %s426 = scalar_lea.hbm %s0, %s425
          %s428 = sshll.u32 %s421, 4
          %s429 = int_to_ptr.vmem [resolvable:$true] %s428
          %431 = dma.hbm_to_vmem [thread:$0]  %s426, 128, %s429, %s418
        $region68: #{tpu_custom_call.1} parent=63 // pred_fallthru
          _
        // Predicated region
        $region69: #{tpu_custom_call.1} parent=63 // pred_check
          %p432 = pneg %p75
        $region70: #{tpu_custom_call.1} parent=63 // pred_check_branch
          %434 = sbr.rel (%p432) target = $region72
        $region71: #{tpu_custom_call.1} parent=63 // pred_region
          %s435 = sand.u32 %s65, 1
          %s436 = scalar_lea.sflag [#allocation6], %s435
          %s437 = sand.u32 %s65, 1
          %s438 = smul.addr %s437, 8
          %s439 = scalar_lea.vmem [#allocation5], %s438
          %s441 = ssub.s32 128, 128
          %442 = vsyncadd %s436, %s441
          %s443 = smul.addr %s29, 128
          %s444 = scalar_lea.hbm %s1, %s443
          %s446 = sshll.u32 %s439, 4
          %s447 = int_to_ptr.vmem [resolvable:$true] %s446
          %449 = dma.hbm_to_vmem [thread:$0]  %s444, 128, %s447, %s436
        $region72: #{tpu_custom_call.1} parent=63 // pred_fallthru
          _
      $region64: #{tpu_custom_call.1} parent=5 // pred_fallthru
        _
      %p450 = scmp.le.s32.totalorder 1, %s29
      %p451 = scmp.lt.s32.totalorder %s29, 3
      %p452 = pnand %p450, %p451
      %p453 = pneg %p452
      // Predicated region
      $region73: #{tpu_custom_call.1} parent=5 // pred_check
        _
      $region74: #{tpu_custom_call.1} parent=5 // pred_check_branch
        %455 = sbr.rel (%p452) target = $region76
      $region75: #{tpu_custom_call.1} parent=5 // pred_region
        %s456 = ssub.s32 %s29, 1
        %s457 = sand.u32 %s42, 1
        %s458 = scalar_lea.sflag [#allocation3], %s457
        %s459 = sand.u32 %s42, 1
        %s460 = smul.addr %s459, 8
        %s461 = scalar_lea.vmem [#allocation2], %s460
        // Predicated region
        $region77: #{tpu_custom_call.1} parent=75 // pred_check
          %p462 = pneg %p55
        $region78: #{tpu_custom_call.1} parent=75 // pred_check_branch
          %464 = sbr.rel (%p462) target = $region80
        $region79: #{tpu_custom_call.1} parent=75 // pred_region
          %465 = dma.done %s458, 128
        $region80: #{tpu_custom_call.1} parent=75 // pred_fallthru
          _
        %s466 = sand.u32 %s68, 1
        %s467 = scalar_lea.sflag [#allocation6], %s466
        %s468 = sand.u32 %s68, 1
        %s469 = smul.addr %s468, 8
        %s470 = scalar_lea.vmem [#allocation5], %s469
        // Predicated region
        $region81: #{tpu_custom_call.1} parent=75 // pred_check
          %p471 = pneg %p81
        $region82: #{tpu_custom_call.1} parent=75 // pred_check_branch
          %473 = sbr.rel (%p471) target = $region84
        $region83: #{tpu_custom_call.1} parent=75 // pred_region
          %474 = dma.done %s467, 128
        $region84: #{tpu_custom_call.1} parent=75 // pred_fallthru
          _
        %s475 = sand.u32 %s42, 1
        %s476 = scalar_lea.sflag [#allocation3], %s475
        %s477 = sand.u32 %s42, 1
        %s478 = smul.addr %s477, 8
        %s479 = scalar_lea.vmem [#allocation2], %s478
        %p480 = pneg %p55
        %p481 = pneg %p52
        %s482 = sand.u32 %s68, 1
        %s483 = scalar_lea.sflag [#allocation6], %s482
        %s484 = sand.u32 %s68, 1
        %s485 = smul.addr %s484, 8
        %s486 = scalar_lea.vmem [#allocation5], %s485
        %p487 = pneg %p81
        %p488 = pneg %p78
        %p489 = pneg %p102
        %p490 = pneg %p99
        %p491 = pneg %p123
        %p492 = pneg %p120
        %p493 = pneg %p144
        %p494 = pneg %p141
        %p495 = pneg %p165
        %p496 = pneg %p162
        %p497 = pneg %p186
        %p498 = pneg %p183
        %p499 = pneg %p207
        %p500 = pneg %p204
        %p501 = pneg %p228
        %p502 = pneg %p225
        %p503 = pneg %p249
        %p504 = pneg %p246
        %p505 = pneg %p270
        %p506 = pneg %p267
        %p507 = pneg %p291
        %p508 = pneg %p288
        %p509 = pneg %p312
        %p510 = pneg %p309
        %p511 = pneg %p333
        %p512 = pneg %p330
        %p513 = pneg %p359
        %p514 = pneg %p356
        %s515 = sand.u32 %s346, 1
        %s516 = scalar_lea.sflag [#allocation4], %s515
        %s517 = sand.u32 %s346, 1
        %s518 = smul.addr %s517, 8
        %s519 = scalar_lea.vmem [#allocation7], %s518
        %v520 = vld [vmem:[%s461] sm:$0xff]
        %vm521 = vcmask 261120
        %v522 = vsel %vm521, %v520, 0.0
        %523 = vadd.xlane.f32.xlu0 %v522
        %v524 = vpop.xlane.xlu0 %523
        %v525 = vrcp.pop 32.0
        %v526 = vmul.f32 %v524, %v525
        %v527 = vsub.f32 %v520, %v526
        %v528 = vmul.f32 %v527, %v527
        %v529 = vsel %vm521, %v528, 0.0
        %530 = vadd.xlane.f32.xlu0 %v529
        %v531 = vpop.xlane.xlu0 %530
        %v532 = vmul.f32 %v531, %v525
        %v533 = vadd.f32 %v532, 1e-06
        %v534 = vrsqrt.pop %v533
        %v535 = vmul.f32 %v527, %v534
        %v536 = vld [vmem:[%s2] sm:$0x1]
        %v538 = vlaneseq
        %v539 = vshrl.u32 %v538, 7
        %v540 = vsub.s32 0, %v539
        %v541 = vrot.slane %v536, %v540
        %v543 = vmul.f32 %v535, %v541
        %v544 = vld [vmem:[%s3] sm:$0x1]
        %v546 = vlaneseq
        %v547 = vshrl.u32 %v546, 7
        %v548 = vsub.s32 0, %v547
        %v549 = vrot.slane %v544, %v548
        %v551 = vadd.f32 %v543, %v549
        %v552 = vld [vmem:[%s4] sm:$0xff]
        %v553 = vld [vmem:[%s4 + $0x8] sm:$0xff]
        %v554 = vld [vmem:[%s4 + $0x10] sm:$0xff]
        %v555 = vld [vmem:[%s4 + $0x18] sm:$0xff]
        %v556 = vld [vmem:[%s5] sm:$0x1]
        %v558 = vlaneseq
        %v559 = vshrl.u32 %v558, 7
        %v560 = vsub.s32 0, %v559
        %v561 = vrot.slane %v556, %v560
        %v564 = vsel %vm521, %v551, 0
        %566 = vmatprep.subr.mxu0 0.0
        %567 = vmatpush1.msra.mxu0 %v552
        %568 = vmatprep.subr.mxu0 0.0
        %569 = vmatpush1.msra.mxu0 %v553
        %570 = vmatprep.subr.mxu0 0.0
        %571 = vmatpush1.msra.mxu0 %v554
        %572 = vmatprep.subr.mxu0 0.0
        %573 = vmatpush1.msra.mxu0 %v555
        %574 = vmatprep.subr.mxu0 0.0
        %575 = vmatpush1.msra.mxu0 0.0
        %576 = vmatprep.subr.mxu0 0.0
        %577 = vmatpush1.msra.mxu0 0.0
        %578 = vmatprep.subr.mxu0 0.0
        %579 = vmatpush1.msra.mxu0 0.0
        %580 = vmatprep.subr.mxu0 0.0
        %581 = vmatpush1.msra.mxu0 0.0
        %582 = vmatprep.subr.mxu0 0.0
        %583 = vmatpush1.msra.mxu0 0.0
        %584 = vmatprep.subr.mxu0 0.0
        %585 = vmatpush1.msra.mxu0 0.0
        %586 = vmatprep.subr.mxu0 0.0
        %587 = vmatpush1.msra.mxu0 0.0
        %588 = vmatprep.subr.mxu0 0.0
        %589 = vmatpush1.msra.mxu0 0.0
        %590 = vmatprep.subr.mxu0 0.0
        %591 = vmatpush1.msra.mxu0 0.0
        %592 = vmatprep.subr.mxu0 0.0
        %593 = vmatpush1.msra.mxu0 0.0
        %594 = vmatprep.subr.mxu0 0.0
        %595 = vmatpush1.msra.mxu0 0.0
        %596 = vmatprep.subr.mxu0 0.0
        %597 = vmatpush1.msra.mxu0 0.0
        %598 = vmatprep.subr.mxu0 0.0
        %599 = vmatpush1.msra.mxu0 0.0
        %600 = vmatprep.subr.mxu0 0.0
        %601 = vmatpush1.msra.mxu0 0.0
        %602 = vmatprep.subr.mxu0 0.0
        %603 = vmatpush1.msra.mxu0 0.0
        %604 = vmatprep.subr.mxu0 0.0
        %605 = vmatpush1.msra.mxu0 0.0
        %606 = vmatprep.subr.mxu0 0.0
        %607 = vmatpush1.msra.mxu0 0.0
        %608 = vmatprep.subr.mxu0 0.0
        %609 = vmatpush1.msra.mxu0 0.0
        %610 = vmatprep.subr.mxu0 0.0
        %611 = vmatpush1.msra.mxu0 0.0
        %612 = vmatprep.subr.mxu0 0.0
        %613 = vmatpush1.msra.mxu0 0.0
        %614 = vmatprep.subr.mxu0 0.0
        %615 = vmatpush1.msra.mxu0 0.0
        %616 = vmatprep.subr.mxu0 0.0
        %617 = vmatpush1.msra.mxu0 0.0
        %618 = vmatprep.subr.mxu0 0.0
        %619 = vmatpush1.msra.mxu0 0.0
        %620 = vmatprep.subr.mxu0 0.0
        %621 = vmatpush1.msra.mxu0 0.0
        %622 = vmatprep.subr.mxu0 0.0
        %623 = vmatpush1.msra.mxu0 0.0
        %624 = vmatprep.subr.mxu0 0.0
        %625 = vmatpush1.msra.mxu0 0.0
        %626 = vmatprep.subr.mxu0 0.0
        %627 = vmatpush1.msra.mxu0 0.0
        %628 = vmatprep.subr.mxu0 0.0
        %629 = vmatpush1.msra.mxu0 0.0
        %630 = vmatprep.mubr.f32.mxu0 0.0
        %631 = vmatmul.mubr.f32.gmra.mrb[0].mxu0 %v564
        %v632 = vpop.f32.mrb[0].mxu0
        %v633 = vadd.f32 %v561, %v632
        %v634 = vpop.f32.mrb[0].mxu0
        %635 = vdwg.mxu0
        %v636 = vld [vmem:[%s470] sm:$0xff]
        %vm637 = vcmp.gt.f32.partialorder %v636, 0.0
        %639 = vrot.lane.b32.xlu0 %v633, 96
        %v640 = vpop.permute.xlu0 %639
        %vm641 = vcmask 64512
        %v642 = vsel %vm641, %v633, 0
        %v644 = vsel %vm641, %v640, 0
        %646 = vmatprep.subr.mxu0 0.0
        %647 = vmatpush1.xpose.msra.mxu0 %v644
        %648 = vmatprep.subr.mxu0 0.0
        %649 = vmatpush1.xpose.msra.mxu0 0.0
        %650 = vmatprep.subr.mxu0 0.0
        %651 = vmatpush1.xpose.msra.mxu0 0.0
        %652 = vmatprep.subr.mxu0 0.0
        %653 = vmatpush1.xpose.msra.mxu0 0.0
        %654 = vmatprep.subr.mxu0 0.0
        %655 = vmatpush1.xpose.msra.mxu0 0.0
        %656 = vmatprep.subr.mxu0 0.0
        %657 = vmatpush1.xpose.msra.mxu0 0.0
        %658 = vmatprep.subr.mxu0 0.0
        %659 = vmatpush1.xpose.msra.mxu0 0.0
        %660 = vmatprep.subr.mxu0 0.0
        %661 = vmatpush1.xpose.msra.mxu0 0.0
        %662 = vmatprep.subr.mxu0 0.0
        %663 = vmatpush1.xpose.msra.mxu0 0.0
        %664 = vmatprep.subr.mxu0 0.0
        %665 = vmatpush1.xpose.msra.mxu0 0.0
        %666 = vmatprep.subr.mxu0 0.0
        %667 = vmatpush1.xpose.msra.mxu0 0.0
        %668 = vmatprep.subr.mxu0 0.0
        %669 = vmatpush1.xpose.msra.mxu0 0.0
        %670 = vmatprep.subr.mxu0 0.0
        %671 = vmatpush1.xpose.msra.mxu0 0.0
        %672 = vmatprep.subr.mxu0 0.0
        %673 = vmatpush1.xpose.msra.mxu0 0.0
        %674 = vmatprep.subr.mxu0 0.0
        %675 = vmatpush1.xpose.msra.mxu0 0.0
        %676 = vmatprep.subr.mxu0 0.0
        %677 = vmatpush1.xpose.msra.mxu0 0.0
        %678 = vmatprep.subr.mxu0 0.0
        %679 = vmatpush1.xpose.msra.mxu0 0.0
        %680 = vmatprep.subr.mxu0 0.0
        %681 = vmatpush1.xpose.msra.mxu0 0.0
        %682 = vmatprep.subr.mxu0 0.0
        %683 = vmatpush1.xpose.msra.mxu0 0.0
        %684 = vmatprep.subr.mxu0 0.0
        %685 = vmatpush1.xpose.msra.mxu0 0.0
        %686 = vmatprep.subr.mxu0 0.0
        %687 = vmatpush1.xpose.msra.mxu0 0.0
        %688 = vmatprep.subr.mxu0 0.0
        %689 = vmatpush1.xpose.msra.mxu0 0.0
        %690 = vmatprep.subr.mxu0 0.0
        %691 = vmatpush1.xpose.msra.mxu0 0.0
        %692 = vmatprep.subr.mxu0 0.0
        %693 = vmatpush1.xpose.msra.mxu0 0.0
        %694 = vmatprep.subr.mxu0 0.0
        %695 = vmatpush1.xpose.msra.mxu0 0.0
        %696 = vmatprep.subr.mxu0 0.0
        %697 = vmatpush1.xpose.msra.mxu0 0.0
        %698 = vmatprep.subr.mxu0 0.0
        %699 = vmatpush1.xpose.msra.mxu0 0.0
        %700 = vmatprep.subr.mxu0 0.0
        %701 = vmatpush1.xpose.msra.mxu0 0.0
        %702 = vmatprep.subr.mxu0 0.0
        %703 = vmatpush1.xpose.msra.mxu0 0.0
        %704 = vmatprep.subr.mxu0 0.0
        %705 = vmatpush1.xpose.msra.mxu0 0.0
        %706 = vmatprep.subr.mxu0 0.0
        %707 = vmatpush1.xpose.msra.mxu0 0.0
        %708 = vmatprep.subr.mxu0 0.0
        %709 = vmatpush1.xpose.msra.mxu0 0.0
        %710 = vmatprep.mubr.f32.mxu0 0.0
        %711 = vmatmul.mubr.f32.gmra.mrb[0].mxu0 %v642
        %v712 = vpop.f32.mrb[0].mxu0
        %v713 = vadd.f32 0.0, %v712
        %v714 = vpop.f32.mrb[0].mxu0
        %715 = vdwg.mxu0
        %v716 = vsel %vm637, -1e+18, %v713
        %v717 = vsel %vm641, %v716, -inf
        %718 = vmax.xlane.f32.xlu0 %v717
        %v719 = vpop.xlane.xlu0 %718
        %v720 = vsub.f32 %v716, %v719
        %v721 = vmul.f32 %v720, 1.442695
        %v722 = vpow.pop %v721
        %v723 = vsel %vm641, %v722, 0.0
        %724 = vadd.xlane.f32.xlu0 %v723
        %v725 = vpop.xlane.xlu0 %724
        %v726 = vrcp.pop %v725
        %v727 = vmul.f32 %v722, %v726
        %728 = vrot.lane.b32.xlu0 %v633, 64
        %v729 = vpop.permute.xlu0 %728
        %v732 = vsel %vm641, %v727, 0
        %734 = vmatprep.subr.mxu0 0.0
        %735 = vmatpush1.msra.mxu0 %v729
        %736 = vmatprep.subr.mxu0 0.0
        %737 = vmatpush1.msra.mxu0 0.0
        %738 = vmatprep.subr.mxu0 0.0
        %739 = vmatpush1.msra.mxu0 0.0
        %740 = vmatprep.subr.mxu0 0.0
        %741 = vmatpush1.msra.mxu0 0.0
        %742 = vmatprep.subr.mxu0 0.0
        %743 = vmatpush1.msra.mxu0 0.0
        %744 = vmatprep.subr.mxu0 0.0
        %745 = vmatpush1.msra.mxu0 0.0
        %746 = vmatprep.subr.mxu0 0.0
        %747 = vmatpush1.msra.mxu0 0.0
        %748 = vmatprep.subr.mxu0 0.0
        %749 = vmatpush1.msra.mxu0 0.0
        %750 = vmatprep.subr.mxu0 0.0
        %751 = vmatpush1.msra.mxu0 0.0
        %752 = vmatprep.subr.mxu0 0.0
        %753 = vmatpush1.msra.mxu0 0.0
        %754 = vmatprep.subr.mxu0 0.0
        %755 = vmatpush1.msra.mxu0 0.0
        %756 = vmatprep.subr.mxu0 0.0
        %757 = vmatpush1.msra.mxu0 0.0
        %758 = vmatprep.subr.mxu0 0.0
        %759 = vmatpush1.msra.mxu0 0.0
        %760 = vmatprep.subr.mxu0 0.0
        %761 = vmatpush1.msra.mxu0 0.0
        %762 = vmatprep.subr.mxu0 0.0
        %763 = vmatpush1.msra.mxu0 0.0
        %764 = vmatprep.subr.mxu0 0.0
        %765 = vmatpush1.msra.mxu0 0.0
        %766 = vmatprep.subr.mxu0 0.0
        %767 = vmatpush1.msra.mxu0 0.0
        %768 = vmatprep.subr.mxu0 0.0
        %769 = vmatpush1.msra.mxu0 0.0
        %770 = vmatprep.subr.mxu0 0.0
        %771 = vmatpush1.msra.mxu0 0.0
        %772 = vmatprep.subr.mxu0 0.0
        %773 = vmatpush1.msra.mxu0 0.0
        %774 = vmatprep.subr.mxu0 0.0
        %775 = vmatpush1.msra.mxu0 0.0
        %776 = vmatprep.subr.mxu0 0.0
        %777 = vmatpush1.msra.mxu0 0.0
        %778 = vmatprep.subr.mxu0 0.0
        %779 = vmatpush1.msra.mxu0 0.0
        %780 = vmatprep.subr.mxu0 0.0
        %781 = vmatpush1.msra.mxu0 0.0
        %782 = vmatprep.subr.mxu0 0.0
        %783 = vmatpush1.msra.mxu0 0.0
        %784 = vmatprep.subr.mxu0 0.0
        %785 = vmatpush1.msra.mxu0 0.0
        %786 = vmatprep.subr.mxu0 0.0
        %787 = vmatpush1.msra.mxu0 0.0
        %788 = vmatprep.subr.mxu0 0.0
        %789 = vmatpush1.msra.mxu0 0.0
        %790 = vmatprep.subr.mxu0 0.0
        %791 = vmatpush1.msra.mxu0 0.0
        %792 = vmatprep.subr.mxu0 0.0
        %793 = vmatpush1.msra.mxu0 0.0
        %794 = vmatprep.subr.mxu0 0.0
        %795 = vmatpush1.msra.mxu0 0.0
        %796 = vmatprep.subr.mxu0 0.0
        %797 = vmatpush1.msra.mxu0 0.0
        %798 = vmatprep.mubr.f32.mxu0 0.0
        %799 = vmatmul.mubr.f32.gmra.mrb[0].mxu0 %v732
        %v800 = vpop.f32.mrb[0].mxu0
        %v801 = vadd.f32 0.0, %v800
        %v802 = vpop.f32.mrb[0].mxu0
        %803 = vdwg.mxu0
        %804 = vrot.lane.b32.xlu0 %v633, 120
        %v805 = vpop.permute.xlu0 %804
        %806 = vrot.lane.b32.xlu0 %v633, 88
        %v807 = vpop.permute.xlu0 %806
        %v808 = vsel %vm641, %v805, 0
        %v810 = vsel %vm641, %v807, 0
        %812 = vmatprep.subr.mxu0 0.0
        %813 = vmatpush1.xpose.msra.mxu0 %v810
        %814 = vmatprep.subr.mxu0 0.0
        %815 = vmatpush1.xpose.msra.mxu0 0.0
        %816 = vmatprep.subr.mxu0 0.0
        %817 = vmatpush1.xpose.msra.mxu0 0.0
        %818 = vmatprep.subr.mxu0 0.0
        %819 = vmatpush1.xpose.msra.mxu0 0.0
        %820 = vmatprep.subr.mxu0 0.0
        %821 = vmatpush1.xpose.msra.mxu0 0.0
        %822 = vmatprep.subr.mxu0 0.0
        %823 = vmatpush1.xpose.msra.mxu0 0.0
        %824 = vmatprep.subr.mxu0 0.0
        %825 = vmatpush1.xpose.msra.mxu0 0.0
        %826 = vmatprep.subr.mxu0 0.0
        %827 = vmatpush1.xpose.msra.mxu0 0.0
        %828 = vmatprep.subr.mxu0 0.0
        %829 = vmatpush1.xpose.msra.mxu0 0.0
        %830 = vmatprep.subr.mxu0 0.0
        %831 = vmatpush1.xpose.msra.mxu0 0.0
        %832 = vmatprep.subr.mxu0 0.0
        %833 = vmatpush1.xpose.msra.mxu0 0.0
        %834 = vmatprep.subr.mxu0 0.0
        %835 = vmatpush1.xpose.msra.mxu0 0.0
        %836 = vmatprep.subr.mxu0 0.0
        %837 = vmatpush1.xpose.msra.mxu0 0.0
        %838 = vmatprep.subr.mxu0 0.0
        %839 = vmatpush1.xpose.msra.mxu0 0.0
        %840 = vmatprep.subr.mxu0 0.0
        %841 = vmatpush1.xpose.msra.mxu0 0.0
        %842 = vmatprep.subr.mxu0 0.0
        %843 = vmatpush1.xpose.msra.mxu0 0.0
        %844 = vmatprep.subr.mxu0 0.0
        %845 = vmatpush1.xpose.msra.mxu0 0.0
        %846 = vmatprep.subr.mxu0 0.0
        %847 = vmatpush1.xpose.msra.mxu0 0.0
        %848 = vmatprep.subr.mxu0 0.0
        %849 = vmatpush1.xpose.msra.mxu0 0.0
        %850 = vmatprep.subr.mxu0 0.0
        %851 = vmatpush1.xpose.msra.mxu0 0.0
        %852 = vmatprep.subr.mxu0 0.0
        %853 = vmatpush1.xpose.msra.mxu0 0.0
        %854 = vmatprep.subr.mxu0 0.0
        %855 = vmatpush1.xpose.msra.mxu0 0.0
        %856 = vmatprep.subr.mxu0 0.0
        %857 = vmatpush1.xpose.msra.mxu0 0.0
        %858 = vmatprep.subr.mxu0 0.0
        %859 = vmatpush1.xpose.msra.mxu0 0.0
        %860 = vmatprep.subr.mxu0 0.0
        %861 = vmatpush1.xpose.msra.mxu0 0.0
        %862 = vmatprep.subr.mxu0 0.0
        %863 = vmatpush1.xpose.msra.mxu0 0.0
        %864 = vmatprep.subr.mxu0 0.0
        %865 = vmatpush1.xpose.msra.mxu0 0.0
        %866 = vmatprep.subr.mxu0 0.0
        %867 = vmatpush1.xpose.msra.mxu0 0.0
        %868 = vmatprep.subr.mxu0 0.0
        %869 = vmatpush1.xpose.msra.mxu0 0.0
        %870 = vmatprep.subr.mxu0 0.0
        %871 = vmatpush1.xpose.msra.mxu0 0.0
        %872 = vmatprep.subr.mxu0 0.0
        %873 = vmatpush1.xpose.msra.mxu0 0.0
        %874 = vmatprep.subr.mxu0 0.0
        %875 = vmatpush1.xpose.msra.mxu0 0.0
        %876 = vmatprep.mubr.f32.mxu0 0.0
        %877 = vmatmul.mubr.f32.gmra.mrb[0].mxu0 %v808
        %v878 = vpop.f32.mrb[0].mxu0
        %v879 = vadd.f32 0.0, %v878
        %v880 = vpop.f32.mrb[0].mxu0
        %881 = vdwg.mxu0
        %v882 = vsel %vm637, -1e+18, %v879
        %v883 = vsel %vm641, %v882, -inf
        %884 = vmax.xlane.f32.xlu0 %v883
        %v885 = vpop.xlane.xlu0 %884
        %v886 = vsub.f32 %v882, %v885
        %v887 = vmul.f32 %v886, 1.442695
        %v888 = vpow.pop %v887
        %v889 = vsel %vm641, %v888, 0.0
        %890 = vadd.xlane.f32.xlu0 %v889
        %v891 = vpop.xlane.xlu0 %890
        %v892 = vrcp.pop %v891
        %v893 = vmul.f32 %v888, %v892
        %894 = vrot.lane.b32.xlu0 %v633, 56
        %v895 = vpop.permute.xlu0 %894
        %v898 = vsel %vm641, %v893, 0
        %900 = vmatprep.subr.mxu0 0.0
        %901 = vmatpush1.msra.mxu0 %v895
        %902 = vmatprep.subr.mxu0 0.0
        %903 = vmatpush1.msra.mxu0 0.0
        %904 = vmatprep.subr.mxu0 0.0
        %905 = vmatpush1.msra.mxu0 0.0
        %906 = vmatprep.subr.mxu0 0.0
        %907 = vmatpush1.msra.mxu0 0.0
        %908 = vmatprep.subr.mxu0 0.0
        %909 = vmatpush1.msra.mxu0 0.0
        %910 = vmatprep.subr.mxu0 0.0
        %911 = vmatpush1.msra.mxu0 0.0
        %912 = vmatprep.subr.mxu0 0.0
        %913 = vmatpush1.msra.mxu0 0.0
        %914 = vmatprep.subr.mxu0 0.0
        %915 = vmatpush1.msra.mxu0 0.0
        %916 = vmatprep.subr.mxu0 0.0
        %917 = vmatpush1.msra.mxu0 0.0
        %918 = vmatprep.subr.mxu0 0.0
        %919 = vmatpush1.msra.mxu0 0.0
        %920 = vmatprep.subr.mxu0 0.0
        %921 = vmatpush1.msra.mxu0 0.0
        %922 = vmatprep.subr.mxu0 0.0
        %923 = vmatpush1.msra.mxu0 0.0
        %924 = vmatprep.subr.mxu0 0.0
        %925 = vmatpush1.msra.mxu0 0.0
        %926 = vmatprep.subr.mxu0 0.0
        %927 = vmatpush1.msra.mxu0 0.0
        %928 = vmatprep.subr.mxu0 0.0
        %929 = vmatpush1.msra.mxu0 0.0
        %930 = vmatprep.subr.mxu0 0.0
        %931 = vmatpush1.msra.mxu0 0.0
        %932 = vmatprep.subr.mxu0 0.0
        %933 = vmatpush1.msra.mxu0 0.0
        %934 = vmatprep.subr.mxu0 0.0
        %935 = vmatpush1.msra.mxu0 0.0
        %936 = vmatprep.subr.mxu0 0.0
        %937 = vmatpush1.msra.mxu0 0.0
        %938 = vmatprep.subr.mxu0 0.0
        %939 = vmatpush1.msra.mxu0 0.0
        %940 = vmatprep.subr.mxu0 0.0
        %941 = vmatpush1.msra.mxu0 0.0
        %942 = vmatprep.subr.mxu0 0.0
        %943 = vmatpush1.msra.mxu0 0.0
        %944 = vmatprep.subr.mxu0 0.0
        %945 = vmatpush1.msra.mxu0 0.0
        %946 = vmatprep.subr.mxu0 0.0
        %947 = vmatpush1.msra.mxu0 0.0
        %948 = vmatprep.subr.mxu0 0.0
        %949 = vmatpush1.msra.mxu0 0.0
        %950 = vmatprep.subr.mxu0 0.0
        %951 = vmatpush1.msra.mxu0 0.0
        %952 = vmatprep.subr.mxu0 0.0
        %953 = vmatpush1.msra.mxu0 0.0
        %954 = vmatprep.subr.mxu0 0.0
        %955 = vmatpush1.msra.mxu0 0.0
        %956 = vmatprep.subr.mxu0 0.0
        %957 = vmatpush1.msra.mxu0 0.0
        %958 = vmatprep.subr.mxu0 0.0
        %959 = vmatpush1.msra.mxu0 0.0
        %960 = vmatprep.subr.mxu0 0.0
        %961 = vmatpush1.msra.mxu0 0.0
        %962 = vmatprep.subr.mxu0 0.0
        %963 = vmatpush1.msra.mxu0 0.0
        %964 = vmatprep.mubr.f32.mxu0 0.0
        %965 = vmatmul.mubr.f32.gmra.mrb[0].mxu0 %v898
        %v966 = vpop.f32.mrb[0].mxu0
        %v967 = vadd.f32 0.0, %v966
        %v968 = vpop.f32.mrb[0].mxu0
        %969 = vdwg.mxu0
        %970 = vrot.lane.b32.xlu0 %v633, 112
        %v971 = vpop.permute.xlu0 %970
        %972 = vrot.lane.b32.xlu0 %v633, 80
        %v973 = vpop.permute.xlu0 %972
        %v974 = vsel %vm641, %v971, 0
        %v976 = vsel %vm641, %v973, 0
        %978 = vmatprep.subr.mxu0 0.0
        %979 = vmatpush1.xpose.msra.mxu0 %v976
        %980 = vmatprep.subr.mxu0 0.0
        %981 = vmatpush1.xpose.msra.mxu0 0.0
        %982 = vmatprep.subr.mxu0 0.0
        %983 = vmatpush1.xpose.msra.mxu0 0.0
        %984 = vmatprep.subr.mxu0 0.0
        %985 = vmatpush1.xpose.msra.mxu0 0.0
        %986 = vmatprep.subr.mxu0 0.0
        %987 = vmatpush1.xpose.msra.mxu0 0.0
        %988 = vmatprep.subr.mxu0 0.0
        %989 = vmatpush1.xpose.msra.mxu0 0.0
        %990 = vmatprep.subr.mxu0 0.0
        %991 = vmatpush1.xpose.msra.mxu0 0.0
        %992 = vmatprep.subr.mxu0 0.0
        %993 = vmatpush1.xpose.msra.mxu0 0.0
        %994 = vmatprep.subr.mxu0 0.0
        %995 = vmatpush1.xpose.msra.mxu0 0.0
        %996 = vmatprep.subr.mxu0 0.0
        %997 = vmatpush1.xpose.msra.mxu0 0.0
        %998 = vmatprep.subr.mxu0 0.0
        %999 = vmatpush1.xpose.msra.mxu0 0.0
        %1000 = vmatprep.subr.mxu0 0.0
        %1001 = vmatpush1.xpose.msra.mxu0 0.0
        %1002 = vmatprep.subr.mxu0 0.0
        %1003 = vmatpush1.xpose.msra.mxu0 0.0
        %1004 = vmatprep.subr.mxu0 0.0
        %1005 = vmatpush1.xpose.msra.mxu0 0.0
        %1006 = vmatprep.subr.mxu0 0.0
        %1007 = vmatpush1.xpose.msra.mxu0 0.0
        %1008 = vmatprep.subr.mxu0 0.0
        %1009 = vmatpush1.xpose.msra.mxu0 0.0
        %1010 = vmatprep.subr.mxu0 0.0
        %1011 = vmatpush1.xpose.msra.mxu0 0.0
        %1012 = vmatprep.subr.mxu0 0.0
        %1013 = vmatpush1.xpose.msra.mxu0 0.0
        %1014 = vmatprep.subr.mxu0 0.0
        %1015 = vmatpush1.xpose.msra.mxu0 0.0
        %1016 = vmatprep.subr.mxu0 0.0
        %1017 = vmatpush1.xpose.msra.mxu0 0.0
        %1018 = vmatprep.subr.mxu0 0.0
        %1019 = vmatpush1.xpose.msra.mxu0 0.0
        %1020 = vmatprep.subr.mxu0 0.0
        %1021 = vmatpush1.xpose.msra.mxu0 0.0
        %1022 = vmatprep.subr.mxu0 0.0
        %1023 = vmatpush1.xpose.msra.mxu0 0.0
        %1024 = vmatprep.subr.mxu0 0.0
        %1025 = vmatpush1.xpose.msra.mxu0 0.0
        %1026 = vmatprep.subr.mxu0 0.0
        %1027 = vmatpush1.xpose.msra.mxu0 0.0
        %1028 = vmatprep.subr.mxu0 0.0
        %1029 = vmatpush1.xpose.msra.mxu0 0.0
        %1030 = vmatprep.subr.mxu0 0.0
        %1031 = vmatpush1.xpose.msra.mxu0 0.0
        %1032 = vmatprep.subr.mxu0 0.0
        %1033 = vmatpush1.xpose.msra.mxu0 0.0
        %1034 = vmatprep.subr.mxu0 0.0
        %1035 = vmatpush1.xpose.msra.mxu0 0.0
        %1036 = vmatprep.subr.mxu0 0.0
        %1037 = vmatpush1.xpose.msra.mxu0 0.0
        %1038 = vmatprep.subr.mxu0 0.0
        %1039 = vmatpush1.xpose.msra.mxu0 0.0
        %1040 = vmatprep.subr.mxu0 0.0
        %1041 = vmatpush1.xpose.msra.mxu0 0.0
        %1042 = vmatprep.mubr.f32.mxu0 0.0
        %1043 = vmatmul.mubr.f32.gmra.mrb[0].mxu0 %v974
        %v1044 = vpop.f32.mrb[0].mxu0
        %v1045 = vadd.f32 0.0, %v1044
        %v1046 = vpop.f32.mrb[0].mxu0
        %1047 = vdwg.mxu0
        %v1048 = vsel %vm637, -1e+18, %v1045
        %v1049 = vsel %vm641, %v1048, -inf
        %1050 = vmax.xlane.f32.xlu0 %v1049
        %v1051 = vpop.xlane.xlu0 %1050
        %v1052 = vsub.f32 %v1048, %v1051
        %v1053 = vmul.f32 %v1052, 1.442695
        %v1054 = vpow.pop %v1053
        %v1055 = vsel %vm641, %v1054, 0.0
        %1056 = vadd.xlane.f32.xlu0 %v1055
        %v1057 = vpop.xlane.xlu0 %1056
        %v1058 = vrcp.pop %v1057
        %v1059 = vmul.f32 %v1054, %v1058
        %1060 = vrot.lane.b32.xlu0 %v633, 48
        %v1061 = vpop.permute.xlu0 %1060
        %v1064 = vsel %vm641, %v1059, 0
        %1066 = vmatprep.subr.mxu0 0.0
        %1067 = vmatpush1.msra.mxu0 %v1061
        %1068 = vmatprep.subr.mxu0 0.0
        %1069 = vmatpush1.msra.mxu0 0.0
        %1070 = vmatprep.subr.mxu0 0.0
        %1071 = vmatpush1.msra.mxu0 0.0
        %1072 = vmatprep.subr.mxu0 0.0
        %1073 = vmatpush1.msra.mxu0 0.0
        %1074 = vmatprep.subr.mxu0 0.0
        %1075 = vmatpush1.msra.mxu0 0.0
        %1076 = vmatprep.subr.mxu0 0.0
        %1077 = vmatpush1.msra.mxu0 0.0
        %1078 = vmatprep.subr.mxu0 0.0
        %1079 = vmatpush1.msra.mxu0 0.0
        %1080 = vmatprep.subr.mxu0 0.0
        %1081 = vmatpush1.msra.mxu0 0.0
        %1082 = vmatprep.subr.mxu0 0.0
        %1083 = vmatpush1.msra.mxu0 0.0
        %1084 = vmatprep.subr.mxu0 0.0
        %1085 = vmatpush1.msra.mxu0 0.0
        %1086 = vmatprep.subr.mxu0 0.0
        %1087 = vmatpush1.msra.mxu0 0.0
        %1088 = vmatprep.subr.mxu0 0.0
        %1089 = vmatpush1.msra.mxu0 0.0
        %1090 = vmatprep.subr.mxu0 0.0
        %1091 = vmatpush1.msra.mxu0 0.0
        %1092 = vmatprep.subr.mxu0 0.0
        %1093 = vmatpush1.msra.mxu0 0.0
        %1094 = vmatprep.subr.mxu0 0.0
        %1095 = vmatpush1.msra.mxu0 0.0
        %1096 = vmatprep.subr.mxu0 0.0
        %1097 = vmatpush1.msra.mxu0 0.0
        %1098 = vmatprep.subr.mxu0 0.0
        %1099 = vmatpush1.msra.mxu0 0.0
        %1100 = vmatprep.subr.mxu0 0.0
        %1101 = vmatpush1.msra.mxu0 0.0
        %1102 = vmatprep.subr.mxu0 0.0
        %1103 = vmatpush1.msra.mxu0 0.0
        %1104 = vmatprep.subr.mxu0 0.0
        %1105 = vmatpush1.msra.mxu0 0.0
        %1106 = vmatprep.subr.mxu0 0.0
        %1107 = vmatpush1.msra.mxu0 0.0
        %1108 = vmatprep.subr.mxu0 0.0
        %1109 = vmatpush1.msra.mxu0 0.0
        %1110 = vmatprep.subr.mxu0 0.0
        %1111 = vmatpush1.msra.mxu0 0.0
        %1112 = vmatprep.subr.mxu0 0.0
        %1113 = vmatpush1.msra.mxu0 0.0
        %1114 = vmatprep.subr.mxu0 0.0
        %1115 = vmatpush1.msra.mxu0 0.0
        %1116 = vmatprep.subr.mxu0 0.0
        %1117 = vmatpush1.msra.mxu0 0.0
        %1118 = vmatprep.subr.mxu0 0.0
        %1119 = vmatpush1.msra.mxu0 0.0
        %1120 = vmatprep.subr.mxu0 0.0
        %1121 = vmatpush1.msra.mxu0 0.0
        %1122 = vmatprep.subr.mxu0 0.0
        %1123 = vmatpush1.msra.mxu0 0.0
        %1124 = vmatprep.subr.mxu0 0.0
        %1125 = vmatpush1.msra.mxu0 0.0
        %1126 = vmatprep.subr.mxu0 0.0
        %1127 = vmatpush1.msra.mxu0 0.0
        %1128 = vmatprep.subr.mxu0 0.0
        %1129 = vmatpush1.msra.mxu0 0.0
        %1130 = vmatprep.mubr.f32.mxu0 0.0
        %1131 = vmatmul.mubr.f32.gmra.mrb[0].mxu0 %v1064
        %v1132 = vpop.f32.mrb[0].mxu0
        %v1133 = vadd.f32 0.0, %v1132
        %v1134 = vpop.f32.mrb[0].mxu0
        %1135 = vdwg.mxu0
        %1136 = vrot.lane.b32.xlu0 %v633, 104
        %v1137 = vpop.permute.xlu0 %1136
        %1138 = vrot.lane.b32.xlu0 %v633, 72
        %v1139 = vpop.permute.xlu0 %1138
        %v1140 = vsel %vm641, %v1137, 0
        %v1142 = vsel %vm641, %v1139, 0
        %1144 = vmatprep.subr.mxu0 0.0
        %1145 = vmatpush1.xpose.msra.mxu0 %v1142
        %1146 = vmatprep.subr.mxu0 0.0
        %1147 = vmatpush1.xpose.msra.mxu0 0.0
        %1148 = vmatprep.subr.mxu0 0.0
        %1149 = vmatpush1.xpose.msra.mxu0 0.0
        %1150 = vmatprep.subr.mxu0 0.0
        %1151 = vmatpush1.xpose.msra.mxu0 0.0
        %1152 = vmatprep.subr.mxu0 0.0
        %1153 = vmatpush1.xpose.msra.mxu0 0.0
        %1154 = vmatprep.subr.mxu0 0.0
        %1155 = vmatpush1.xpose.msra.mxu0 0.0
        %1156 = vmatprep.subr.mxu0 0.0
        %1157 = vmatpush1.xpose.msra.mxu0 0.0
        %1158 = vmatprep.subr.mxu0 0.0
        %1159 = vmatpush1.xpose.msra.mxu0 0.0
        %1160 = vmatprep.subr.mxu0 0.0
        %1161 = vmatpush1.xpose.msra.mxu0 0.0
        %1162 = vmatprep.subr.mxu0 0.0
        %1163 = vmatpush1.xpose.msra.mxu0 0.0
        %1164 = vmatprep.subr.mxu0 0.0
        %1165 = vmatpush1.xpose.msra.mxu0 0.0
        %1166 = vmatprep.subr.mxu0 0.0
        %1167 = vmatpush1.xpose.msra.mxu0 0.0
        %1168 = vmatprep.subr.mxu0 0.0
        %1169 = vmatpush1.xpose.msra.mxu0 0.0
        %1170 = vmatprep.subr.mxu0 0.0
        %1171 = vmatpush1.xpose.msra.mxu0 0.0
        %1172 = vmatprep.subr.mxu0 0.0
        %1173 = vmatpush1.xpose.msra.mxu0 0.0
        %1174 = vmatprep.subr.mxu0 0.0
        %1175 = vmatpush1.xpose.msra.mxu0 0.0
        %1176 = vmatprep.subr.mxu0 0.0
        %1177 = vmatpush1.xpose.msra.mxu0 0.0
        %1178 = vmatprep.subr.mxu0 0.0
        %1179 = vmatpush1.xpose.msra.mxu0 0.0
        %1180 = vmatprep.subr.mxu0 0.0
        %1181 = vmatpush1.xpose.msra.mxu0 0.0
        %1182 = vmatprep.subr.mxu0 0.0
        %1183 = vmatpush1.xpose.msra.mxu0 0.0
        %1184 = vmatprep.subr.mxu0 0.0
        %1185 = vmatpush1.xpose.msra.mxu0 0.0
        %1186 = vmatprep.subr.mxu0 0.0
        %1187 = vmatpush1.xpose.msra.mxu0 0.0
        %1188 = vmatprep.subr.mxu0 0.0
        %1189 = vmatpush1.xpose.msra.mxu0 0.0
        %1190 = vmatprep.subr.mxu0 0.0
        %1191 = vmatpush1.xpose.msra.mxu0 0.0
        %1192 = vmatprep.subr.mxu0 0.0
        %1193 = vmatpush1.xpose.msra.mxu0 0.0
        %1194 = vmatprep.subr.mxu0 0.0
        %1195 = vmatpush1.xpose.msra.mxu0 0.0
        %1196 = vmatprep.subr.mxu0 0.0
        %1197 = vmatpush1.xpose.msra.mxu0 0.0
        %1198 = vmatprep.subr.mxu0 0.0
        %1199 = vmatpush1.xpose.msra.mxu0 0.0
        %1200 = vmatprep.subr.mxu0 0.0
        %1201 = vmatpush1.xpose.msra.mxu0 0.0
        %1202 = vmatprep.subr.mxu0 0.0
        %1203 = vmatpush1.xpose.msra.mxu0 0.0
        %1204 = vmatprep.subr.mxu0 0.0
        %1205 = vmatpush1.xpose.msra.mxu0 0.0
        %1206 = vmatprep.subr.mxu0 0.0
        %1207 = vmatpush1.xpose.msra.mxu0 0.0
        %1208 = vmatprep.mubr.f32.mxu0 0.0
        %1209 = vmatmul.mubr.f32.gmra.mrb[0].mxu0 %v1140
        %v1210 = vpop.f32.mrb[0].mxu0
        %v1211 = vadd.f32 0.0, %v1210
        %v1212 = vpop.f32.mrb[0].mxu0
        %1213 = vdwg.mxu0
        %v1214 = vsel %vm637, -1e+18, %v1211
        %v1215 = vsel %vm641, %v1214, -inf
        %1216 = vmax.xlane.f32.xlu0 %v1215
        %v1217 = vpop.xlane.xlu0 %1216
        %v1218 = vsub.f32 %v1214, %v1217
        %v1219 = vmul.f32 %v1218, 1.442695
        %v1220 = vpow.pop %v1219
        %v1221 = vsel %vm641, %v1220, 0.0
        %1222 = vadd.xlane.f32.xlu0 %v1221
        %v1223 = vpop.xlane.xlu0 %1222
        %v1224 = vrcp.pop %v1223
        %v1225 = vmul.f32 %v1220, %v1224
        %1226 = vrot.lane.b32.xlu0 %v633, 40
        %v1227 = vpop.permute.xlu0 %1226
        %v1230 = vsel %vm641, %v1225, 0
        %1232 = vmatprep.subr.mxu0 0.0
        %1233 = vmatpush1.msra.mxu0 %v1227
        %1234 = vmatprep.subr.mxu0 0.0
        %1235 = vmatpush1.msra.mxu0 0.0
        %1236 = vmatprep.subr.mxu0 0.0
        %1237 = vmatpush1.msra.mxu0 0.0
        %1238 = vmatprep.subr.mxu0 0.0
        %1239 = vmatpush1.msra.mxu0 0.0
        %1240 = vmatprep.subr.mxu0 0.0
        %1241 = vmatpush1.msra.mxu0 0.0
        %1242 = vmatprep.subr.mxu0 0.0
        %1243 = vmatpush1.msra.mxu0 0.0
        %1244 = vmatprep.subr.mxu0 0.0
        %1245 = vmatpush1.msra.mxu0 0.0
        %1246 = vmatprep.subr.mxu0 0.0
        %1247 = vmatpush1.msra.mxu0 0.0
        %1248 = vmatprep.subr.mxu0 0.0
        %1249 = vmatpush1.msra.mxu0 0.0
        %1250 = vmatprep.subr.mxu0 0.0
        %1251 = vmatpush1.msra.mxu0 0.0
        %1252 = vmatprep.subr.mxu0 0.0
        %1253 = vmatpush1.msra.mxu0 0.0
        %1254 = vmatprep.subr.mxu0 0.0
        %1255 = vmatpush1.msra.mxu0 0.0
        %1256 = vmatprep.subr.mxu0 0.0
        %1257 = vmatpush1.msra.mxu0 0.0
        %1258 = vmatprep.subr.mxu0 0.0
        %1259 = vmatpush1.msra.mxu0 0.0
        %1260 = vmatprep.subr.mxu0 0.0
        %1261 = vmatpush1.msra.mxu0 0.0
        %1262 = vmatprep.subr.mxu0 0.0
        %1263 = vmatpush1.msra.mxu0 0.0
        %1264 = vmatprep.subr.mxu0 0.0
        %1265 = vmatpush1.msra.mxu0 0.0
        %1266 = vmatprep.subr.mxu0 0.0
        %1267 = vmatpush1.msra.mxu0 0.0
        %1268 = vmatprep.subr.mxu0 0.0
        %1269 = vmatpush1.msra.mxu0 0.0
        %1270 = vmatprep.subr.mxu0 0.0
        %1271 = vmatpush1.msra.mxu0 0.0
        %1272 = vmatprep.subr.mxu0 0.0
        %1273 = vmatpush1.msra.mxu0 0.0
        %1274 = vmatprep.subr.mxu0 0.0
        %1275 = vmatpush1.msra.mxu0 0.0
        %1276 = vmatprep.subr.mxu0 0.0
        %1277 = vmatpush1.msra.mxu0 0.0
        %1278 = vmatprep.subr.mxu0 0.0
        %1279 = vmatpush1.msra.mxu0 0.0
        %1280 = vmatprep.subr.mxu0 0.0
        %1281 = vmatpush1.msra.mxu0 0.0
        %1282 = vmatprep.subr.mxu0 0.0
        %1283 = vmatpush1.msra.mxu0 0.0
        %1284 = vmatprep.subr.mxu0 0.0
        %1285 = vmatpush1.msra.mxu0 0.0
        %1286 = vmatprep.subr.mxu0 0.0
        %1287 = vmatpush1.msra.mxu0 0.0
        %1288 = vmatprep.subr.mxu0 0.0
        %1289 = vmatpush1.msra.mxu0 0.0
        %1290 = vmatprep.subr.mxu0 0.0
        %1291 = vmatpush1.msra.mxu0 0.0
        %1292 = vmatprep.subr.mxu0 0.0
        %1293 = vmatpush1.msra.mxu0 0.0
        %1294 = vmatprep.subr.mxu0 0.0
        %1295 = vmatpush1.msra.mxu0 0.0
        %1296 = vmatprep.mubr.f32.mxu0 0.0
        %1297 = vmatmul.mubr.f32.gmra.mrb[0].mxu0 %v1230
        %v1298 = vpop.f32.mrb[0].mxu0
        %v1299 = vadd.f32 0.0, %v1298
        %v1300 = vpop.f32.mrb[0].mxu0
        %1301 = vdwg.mxu0
        %1303 = vrot.lane.b32.xlu0 %v967, 8
        %v1304 = vpop.permute.xlu0 %1303
        %1307 = vrot.lane.b32.xlu0 %v1133, 16
        %v1308 = vpop.permute.xlu0 %1307
        %1311 = vrot.lane.b32.xlu0 %v1299, 24
        %v1312 = vpop.permute.xlu0 %1311
        %v1314 = vsel %vm641, %v801, %v1304
        %vm1315 = vcmask 130048
        %v1316 = vsel %vm1315, %v1314, %v1308
        %vm1317 = vcmask 195584
        %v1318 = vsel %vm1317, %v1316, %v1312
        %v1319 = vld [vmem:[%s6] sm:$0xff]
        %v1320 = vld [vmem:[%s6 + $0x8] sm:$0xff]
        %v1321 = vld [vmem:[%s6 + $0x10] sm:$0xff]
        %v1322 = vld [vmem:[%s6 + $0x18] sm:$0xff]
        %v1323 = vld [vmem:[%s7] sm:$0x1]
        %v1325 = vlaneseq
        %v1326 = vshrl.u32 %v1325, 7
        %v1327 = vsub.s32 0, %v1326
        %v1328 = vrot.slane %v1323, %v1327
        %v1331 = vsel %vm521, %v1318, 0
        %1333 = vmatprep.subr.mxu0 0.0
        %1334 = vmatpush1.msra.mxu0 %v1319
        %1335 = vmatprep.subr.mxu0 0.0
        %1336 = vmatpush1.msra.mxu0 %v1320
        %1337 = vmatprep.subr.mxu0 0.0
        %1338 = vmatpush1.msra.mxu0 %v1321
        %1339 = vmatprep.subr.mxu0 0.0
        %1340 = vmatpush1.msra.mxu0 %v1322
        %1341 = vmatprep.subr.mxu0 0.0
        %1342 = vmatpush1.msra.mxu0 0.0
        %1343 = vmatprep.subr.mxu0 0.0
        %1344 = vmatpush1.msra.mxu0 0.0
        %1345 = vmatprep.subr.mxu0 0.0
        %1346 = vmatpush1.msra.mxu0 0.0
        %1347 = vmatprep.subr.mxu0 0.0
        %1348 = vmatpush1.msra.mxu0 0.0
        %1349 = vmatprep.subr.mxu0 0.0
        %1350 = vmatpush1.msra.mxu0 0.0
        %1351 = vmatprep.subr.mxu0 0.0
        %1352 = vmatpush1.msra.mxu0 0.0
        %1353 = vmatprep.subr.mxu0 0.0
        %1354 = vmatpush1.msra.mxu0 0.0
        %1355 = vmatprep.subr.mxu0 0.0
        %1356 = vmatpush1.msra.mxu0 0.0
        %1357 = vmatprep.subr.mxu0 0.0
        %1358 = vmatpush1.msra.mxu0 0.0
        %1359 = vmatprep.subr.mxu0 0.0
        %1360 = vmatpush1.msra.mxu0 0.0
        %1361 = vmatprep.subr.mxu0 0.0
        %1362 = vmatpush1.msra.mxu0 0.0
        %1363 = vmatprep.subr.mxu0 0.0
        %1364 = vmatpush1.msra.mxu0 0.0
        %1365 = vmatprep.subr.mxu0 0.0
        %1366 = vmatpush1.msra.mxu0 0.0
        %1367 = vmatprep.subr.mxu0 0.0
        %1368 = vmatpush1.msra.mxu0 0.0
        %1369 = vmatprep.subr.mxu0 0.0
        %1370 = vmatpush1.msra.mxu0 0.0
        %1371 = vmatprep.subr.mxu0 0.0
        %1372 = vmatpush1.msra.mxu0 0.0
        %1373 = vmatprep.subr.mxu0 0.0
        %1374 = vmatpush1.msra.mxu0 0.0
        %1375 = vmatprep.subr.mxu0 0.0
        %1376 = vmatpush1.msra.mxu0 0.0
        %1377 = vmatprep.subr.mxu0 0.0
        %1378 = vmatpush1.msra.mxu0 0.0
        %1379 = vmatprep.subr.mxu0 0.0
        %1380 = vmatpush1.msra.mxu0 0.0
        %1381 = vmatprep.subr.mxu0 0.0
        %1382 = vmatpush1.msra.mxu0 0.0
        %1383 = vmatprep.subr.mxu0 0.0
        %1384 = vmatpush1.msra.mxu0 0.0
        %1385 = vmatprep.subr.mxu0 0.0
        %1386 = vmatpush1.msra.mxu0 0.0
        %1387 = vmatprep.subr.mxu0 0.0
        %1388 = vmatpush1.msra.mxu0 0.0
        %1389 = vmatprep.subr.mxu0 0.0
        %1390 = vmatpush1.msra.mxu0 0.0
        %1391 = vmatprep.subr.mxu0 0.0
        %1392 = vmatpush1.msra.mxu0 0.0
        %1393 = vmatprep.subr.mxu0 0.0
        %1394 = vmatpush1.msra.mxu0 0.0
        %1395 = vmatprep.subr.mxu0 0.0
        %1396 = vmatpush1.msra.mxu0 0.0
        %1397 = vmatprep.mubr.f32.mxu0 0.0
        %1398 = vmatmul.mubr.f32.gmra.mrb[0].mxu0 %v1331
        %v1399 = vpop.f32.mrb[0].mxu0
        %v1400 = vadd.f32 %v1328, %v1399
        %v1401 = vpop.f32.mrb[0].mxu0
        %1402 = vdwg.mxu0
        %v1403 = vadd.f32 %v1400, %v520
        %v1404 = vsel %vm521, %v1403, 0.0
        %1405 = vadd.xlane.f32.xlu0 %v1404
        %v1406 = vpop.xlane.xlu0 %1405
        %v1407 = vmul.f32 %v1406, %v525
        %v1408 = vsub.f32 %v1403, %v1407
        %v1409 = vmul.f32 %v1408, %v1408
        %v1410 = vsel %vm521, %v1409, 0.0
        %1411 = vadd.xlane.f32.xlu0 %v1410
        %v1412 = vpop.xlane.xlu0 %1411
        %v1413 = vmul.f32 %v1412, %v525
        %v1414 = vadd.f32 %v1413, 1e-06
        %v1415 = vrsqrt.pop %v1414
        %v1416 = vmul.f32 %v1408, %v1415
        %v1417 = vld [vmem:[%s8] sm:$0x1]
        %v1419 = vlaneseq
        %v1420 = vshrl.u32 %v1419, 7
        %v1421 = vsub.s32 0, %v1420
        %v1422 = vrot.slane %v1417, %v1421
        %v1424 = vmul.f32 %v1416, %v1422
        %v1425 = vld [vmem:[%s9] sm:$0x1]
        %v1427 = vlaneseq
        %v1428 = vshrl.u32 %v1427, 7
        %v1429 = vsub.s32 0, %v1428
        %v1430 = vrot.slane %v1425, %v1429
        %v1432 = vadd.f32 %v1424, %v1430
        %v1433 = vld [vmem:[%s10] sm:$0xff]
        %v1434 = vld [vmem:[%s10 + $0x8] sm:$0xff]
        %v1435 = vld [vmem:[%s10 + $0x10] sm:$0xff]
        %v1436 = vld [vmem:[%s10 + $0x18] sm:$0xff]
        %v1437 = vld [vmem:[%s11] sm:$0x1]
        %v1439 = vlaneseq
        %v1440 = vshrl.u32 %v1439, 7
        %v1441 = vsub.s32 0, %v1440
        %v1442 = vrot.slane %v1437, %v1441
        %v1445 = vsel %vm521, %v1432, 0
        %1447 = vmatprep.subr.mxu0 0.0
        %1448 = vmatpush1.msra.mxu0 %v1433
        %1449 = vmatprep.subr.mxu0 0.0
        %1450 = vmatpush1.msra.mxu0 %v1434
        %1451 = vmatprep.subr.mxu0 0.0
        %1452 = vmatpush1.msra.mxu0 %v1435
        %1453 = vmatprep.subr.mxu0 0.0
        %1454 = vmatpush1.msra.mxu0 %v1436
        %1455 = vmatprep.subr.mxu0 0.0
        %1456 = vmatpush1.msra.mxu0 0.0
        %1457 = vmatprep.subr.mxu0 0.0
        %1458 = vmatpush1.msra.mxu0 0.0
        %1459 = vmatprep.subr.mxu0 0.0
        %1460 = vmatpush1.msra.mxu0 0.0
        %1461 = vmatprep.subr.mxu0 0.0
        %1462 = vmatpush1.msra.mxu0 0.0
        %1463 = vmatprep.subr.mxu0 0.0
        %1464 = vmatpush1.msra.mxu0 0.0
        %1465 = vmatprep.subr.mxu0 0.0
        %1466 = vmatpush1.msra.mxu0 0.0
        %1467 = vmatprep.subr.mxu0 0.0
        %1468 = vmatpush1.msra.mxu0 0.0
        %1469 = vmatprep.subr.mxu0 0.0
        %1470 = vmatpush1.msra.mxu0 0.0
        %1471 = vmatprep.subr.mxu0 0.0
        %1472 = vmatpush1.msra.mxu0 0.0
        %1473 = vmatprep.subr.mxu0 0.0
        %1474 = vmatpush1.msra.mxu0 0.0
        %1475 = vmatprep.subr.mxu0 0.0
        %1476 = vmatpush1.msra.mxu0 0.0
        %1477 = vmatprep.subr.mxu0 0.0
        %1478 = vmatpush1.msra.mxu0 0.0
        %1479 = vmatprep.subr.mxu0 0.0
        %1480 = vmatpush1.msra.mxu0 0.0
        %1481 = vmatprep.subr.mxu0 0.0
        %1482 = vmatpush1.msra.mxu0 0.0
        %1483 = vmatprep.subr.mxu0 0.0
        %1484 = vmatpush1.msra.mxu0 0.0
        %1485 = vmatprep.subr.mxu0 0.0
        %1486 = vmatpush1.msra.mxu0 0.0
        %1487 = vmatprep.subr.mxu0 0.0
        %1488 = vmatpush1.msra.mxu0 0.0
        %1489 = vmatprep.subr.mxu0 0.0
        %1490 = vmatpush1.msra.mxu0 0.0
        %1491 = vmatprep.subr.mxu0 0.0
        %1492 = vmatpush1.msra.mxu0 0.0
        %1493 = vmatprep.subr.mxu0 0.0
        %1494 = vmatpush1.msra.mxu0 0.0
        %1495 = vmatprep.subr.mxu0 0.0
        %1496 = vmatpush1.msra.mxu0 0.0
        %1497 = vmatprep.subr.mxu0 0.0
        %1498 = vmatpush1.msra.mxu0 0.0
        %1499 = vmatprep.subr.mxu0 0.0
        %1500 = vmatpush1.msra.mxu0 0.0
        %1501 = vmatprep.subr.mxu0 0.0
        %1502 = vmatpush1.msra.mxu0 0.0
        %1503 = vmatprep.subr.mxu0 0.0
        %1504 = vmatpush1.msra.mxu0 0.0
        %1505 = vmatprep.subr.mxu0 0.0
        %1506 = vmatpush1.msra.mxu0 0.0
        %1507 = vmatprep.subr.mxu0 0.0
        %1508 = vmatpush1.msra.mxu0 0.0
        %1509 = vmatprep.subr.mxu0 0.0
        %1510 = vmatpush1.msra.mxu0 0.0
        %1511 = vmatprep.mubr.f32.mxu0 0.0
        %1512 = vmatmul.mubr.f32.gmra.mrb[0].mxu0 %v1445
        %v1513 = vpop.f32.mrb[0].mxu0
        %v1514 = vadd.f32 %v1442, %v1513
        %v1515 = vpop.f32.mrb[0].mxu0
        %1516 = vdwg.mxu0
        %v1517 = vmul.f32 %v1514, 0.5
        %v1518 = vmul.f32 %v1514, 0.044715
        %v1519 = vmul.f32 %v1518, %v1514
        %v1520 = vmul.f32 %v1519, %v1514
        %v1521 = vadd.f32 %v1514, %v1520
        %v1522 = vmul.f32 %v1521, 0.7978846
        %v1523 = vtanh.pop %v1522
        %v1524 = vadd.f32 %v1523, 1.0
        %v1525 = vmul.f32 %v1517, %v1524
        %v1526 = vld [vmem:[%s12] sm:$0xff]
        %v1527 = vld [vmem:[%s12 + $0x8] sm:$0xff]
        %v1528 = vld [vmem:[%s12 + $0x10] sm:$0xff]
        %v1529 = vld [vmem:[%s12 + $0x18] sm:$0xff]
        %v1530 = vld [vmem:[%s12 + $0x20] sm:$0xff]
        %v1531 = vld [vmem:[%s12 + $0x28] sm:$0xff]
        %v1532 = vld [vmem:[%s12 + $0x30] sm:$0xff]
        %v1533 = vld [vmem:[%s12 + $0x38] sm:$0xff]
        %v1534 = vld [vmem:[%s13] sm:$0x1]
        %v1536 = vlaneseq
        %v1537 = vshrl.u32 %v1536, 7
        %v1538 = vsub.s32 0, %v1537
        %v1539 = vrot.slane %v1534, %v1538
        %vm1541 = vcmask 523264
        %v1543 = vsel %vm1541, %v1525, 0
        %1545 = vmatprep.subr.mxu0 0.0
        %1546 = vmatpush1.msra.mxu0 %v1526
        %1547 = vmatprep.subr.mxu0 0.0
        %1548 = vmatpush1.msra.mxu0 %v1527
        %1549 = vmatprep.subr.mxu0 0.0
        %1550 = vmatpush1.msra.mxu0 %v1528
        %1551 = vmatprep.subr.mxu0 0.0
        %1552 = vmatpush1.msra.mxu0 %v1529
        %1553 = vmatprep.subr.mxu0 0.0
        %1554 = vmatpush1.msra.mxu0 %v1530
        %1555 = vmatprep.subr.mxu0 0.0
        %1556 = vmatpush1.msra.mxu0 %v1531
        %1557 = vmatprep.subr.mxu0 0.0
        %1558 = vmatpush1.msra.mxu0 %v1532
        %1559 = vmatprep.subr.mxu0 0.0
        %1560 = vmatpush1.msra.mxu0 %v1533
        %1561 = vmatprep.subr.mxu0 0.0
        %1562 = vmatpush1.msra.mxu0 0.0
        %1563 = vmatprep.subr.mxu0 0.0
        %1564 = vmatpush1.msra.mxu0 0.0
        %1565 = vmatprep.subr.mxu0 0.0
        %1566 = vmatpush1.msra.mxu0 0.0
        %1567 = vmatprep.subr.mxu0 0.0
        %1568 = vmatpush1.msra.mxu0 0.0
        %1569 = vmatprep.subr.mxu0 0.0
        %1570 = vmatpush1.msra.mxu0 0.0
        %1571 = vmatprep.subr.mxu0 0.0
        %1572 = vmatpush1.msra.mxu0 0.0
        %1573 = vmatprep.subr.mxu0 0.0
        %1574 = vmatpush1.msra.mxu0 0.0
        %1575 = vmatprep.subr.mxu0 0.0
        %1576 = vmatpush1.msra.mxu0 0.0
        %1577 = vmatprep.subr.mxu0 0.0
        %1578 = vmatpush1.msra.mxu0 0.0
        %1579 = vmatprep.subr.mxu0 0.0
        %1580 = vmatpush1.msra.mxu0 0.0
        %1581 = vmatprep.subr.mxu0 0.0
        %1582 = vmatpush1.msra.mxu0 0.0
        %1583 = vmatprep.subr.mxu0 0.0
        %1584 = vmatpush1.msra.mxu0 0.0
        %1585 = vmatprep.subr.mxu0 0.0
        %1586 = vmatpush1.msra.mxu0 0.0
        %1587 = vmatprep.subr.mxu0 0.0
        %1588 = vmatpush1.msra.mxu0 0.0
        %1589 = vmatprep.subr.mxu0 0.0
        %1590 = vmatpush1.msra.mxu0 0.0
        %1591 = vmatprep.subr.mxu0 0.0
        %1592 = vmatpush1.msra.mxu0 0.0
        %1593 = vmatprep.subr.mxu0 0.0
        %1594 = vmatpush1.msra.mxu0 0.0
        %1595 = vmatprep.subr.mxu0 0.0
        %1596 = vmatpush1.msra.mxu0 0.0
        %1597 = vmatprep.subr.mxu0 0.0
        %1598 = vmatpush1.msra.mxu0 0.0
        %1599 = vmatprep.subr.mxu0 0.0
        %1600 = vmatpush1.msra.mxu0 0.0
        %1601 = vmatprep.subr.mxu0 0.0
        %1602 = vmatpush1.msra.mxu0 0.0
        %1603 = vmatprep.subr.mxu0 0.0
        %1604 = vmatpush1.msra.mxu0 0.0
        %1605 = vmatprep.subr.mxu0 0.0
        %1606 = vmatpush1.msra.mxu0 0.0
        %1607 = vmatprep.subr.mxu0 0.0
        %1608 = vmatpush1.msra.mxu0 0.0
        %1609 = vmatprep.mubr.f32.mxu0 0.0
        %1610 = vmatmul.mubr.f32.gmra.mrb[0].mxu0 %v1543
        %v1611 = vpop.f32.mrb[0].mxu0
        %v1612 = vadd.f32 %v1539, %v1611
        %v1613 = vpop.f32.mrb[0].mxu0
        %1614 = vdwg.mxu0
        %v1615 = vadd.f32 %v1612, %v1403
        %1616 = vst.msk [vmem:[%s519] sm:$0xff] %vm521, %v1615
        %s1617 = sand.u32 %s346, 1
        %s1618 = scalar_lea.sflag [#allocation4], %s1617
        %s1619 = sand.u32 %s346, 1
        %s1620 = smul.addr %s1619, 8
        %s1621 = scalar_lea.vmem [#allocation7], %s1620
        // Predicated region
        $region85: #{tpu_custom_call.1} parent=75 // pred_check
          %p1622 = pneg %p356
        $region86: #{tpu_custom_call.1} parent=75 // pred_check_branch
          %1624 = sbr.rel (%p1622) target = $region88
        $region87: #{tpu_custom_call.1} parent=75 // pred_region
          %s1626 = ssub.s32 128, 128
          %1627 = vsyncadd %s1618, %s1626
          %s1628 = smul.addr %s34, 128
          %s1629 = scalar_lea.hbm %s14, %s1628
          %s1631 = sshll.u32 %s1621, 4
          %s1632 = int_to_ptr.vmem [resolvable:$true] %s1631
          %1634 = dma.vmem_to_hbm [thread:$0]  %s1632, 128, %s1629, %s1618
        $region88: #{tpu_custom_call.1} parent=75 // pred_fallthru
          _
      $region76: #{tpu_custom_call.1} parent=5 // pred_fallthru
        _
      %p1635 = scmp.le.s32.totalorder 2, %s29
      // Predicated region
      $region89: #{tpu_custom_call.1} parent=5 // pred_check
        %p1636 = pneg %p1635
      $region90: #{tpu_custom_call.1} parent=5 // pred_check_branch
        %1638 = sbr.rel (%p1636) target = $region92
      $region91: #{tpu_custom_call.1} parent=5 // pred_region
        %s1639 = ssub.s32 %s29, 2
        // Predicated region
        $region93: #{tpu_custom_call.1} parent=91 // pred_check
          %p1640 = pneg %p362
        $region94: #{tpu_custom_call.1} parent=91 // pred_check_branch
          %1642 = sbr.rel (%p1640) target = $region96
        $region95: #{tpu_custom_call.1} parent=91 // pred_region
          %s1643 = sand.u32 %s347, 1
          %s1644 = scalar_lea.sflag [#allocation4], %s1643
          %s1645 = sand.u32 %s347, 1
          %s1646 = smul.addr %s1645, 8
          %s1647 = scalar_lea.vmem [#allocation7], %s1646
          %1648 = dma.done %s1644, 128
        $region96: #{tpu_custom_call.1} parent=91 // pred_fallthru
          _
      $region92: #{tpu_custom_call.1} parent=5 // pred_fallthru
        _
    $region6: #{tpu_custom_call.1} parent=1 // loop_footer
      %s33 = sadd.s32 1, %s29
    $region7: #{tpu_custom_call.1} parent=1 // loop_footer_branch
      %28 = sbr.rel target = $region3
    $region8: #{tpu_custom_call.1} parent=1 // loop_exit
      _
    %1649 = vsyncpa [#allocation3], 1
    %s1650 = scalar_lea.sflag [#allocation3], 1
    %1651 = vsyncpa %s1650, 1
    %1652 = vsyncpa [#allocation6], 1
    %s1653 = scalar_lea.sflag [#allocation6], 1
    %1654 = vsyncpa %s1653, 1
    %1655 = vsyncpa [#allocation4], 1
    %s1656 = scalar_lea.sflag [#allocation4], 1
    %1657 = vsyncpa %s1656, 1

</llo_original>
